<compile_context>
chip_gen: v6e
topology: v6e:2x2x1
jax: 0.10.0
libtpu: 0.0.40
codegen_flags: <defaults>
</compile_context>

<pallas_src>
import jax
import jax.numpy as jnp
from jax.experimental import pallas as pl
from jax.experimental.pallas import tpu as pltpu


# ----------------------------------------------------------------------------
# Fused DoubleConv kernel (9-tap shifted-matmul formulation)
# ----------------------------------------------------------------------------

def _make_doubleconv_kernel(H, W, Cin, Cmid, Cout):
    HW = H * W

    def conv3x3_taps(act, w_ref, masks):
        """3x3 conv as 9 shifted matmuls.

        act:    (C, HW) f32, channels on sublanes / flattened pixels on lanes.
        w_ref:  (9, Co, C) bf16 tap-major weights (BN scale already folded).
        masks:  list of 9 (1, HW) bool edge masks (None = all valid).
        Returns (Co, HW) f32 accumulator.
        """
        Co = w_ref.shape[1]
        acc = jnp.zeros((Co, HW), jnp.float32)
        k = 0
        for dy in (-1, 0, 1):
            for dx in (-1, 0, 1):
                off = dy * W + dx                      # source pixel offset
                if off == 0:
                    shifted = act
                else:
                    # shifted[r] = act[r + off] for in-bounds taps (mask kills
                    # the wrapped / out-of-image lanes).  Lane roll -> XLU.
                    shifted = pltpu.roll(act, shift=(-off) % HW, axis=1)
                if masks[k] is not None:
                    shifted = jnp.where(masks[k], shifted, 0.0)
                acc = acc + jnp.dot(w_ref[k], shifted.astype(jnp.bfloat16),
                                    preferred_element_type=jnp.float32)
                k += 1
        return acc

    def kernel(x_ref, w1_ref, t1_ref, w2_ref, t2_ref, o_ref):
        # Edge-validity masks over the flattened pixel (lane) axis; static,
        # computed once and shared by both convs.
        r = jax.lax.broadcasted_iota(jnp.int32, (1, HW), 1)
        col = r % W
        vy = {-1: r >= W, 0: None, 1: r < HW - W}        # source row in [0,H)
        vx = {-1: col >= 1, 0: None, 1: col <= W - 2}    # source col in [0,W)
        masks = []
        for dy in (-1, 0, 1):
            for dx in (-1, 0, 1):
                parts = [m for m in (vy[dy], vx[dx]) if m is not None]
                if not parts:
                    masks.append(None)
                elif len(parts) == 1:
                    masks.append(parts[0])
                else:
                    masks.append(parts[0] & parts[1])

        # conv1 (+ folded-BN shift) + ReLU   -> intermediate stays in (C, HW)
        h1 = jnp.maximum(conv3x3_taps(x_ref[0], w1_ref, masks) + t1_ref[...],
                         0.0)
        # conv2 (+ folded-BN shift) + ReLU   -> lane-dense (Cout, HW) == NCHW
        y2 = jnp.maximum(conv3x3_taps(h1, w2_ref, masks) + t2_ref[...], 0.0)
        o_ref[0] = y2

    return kernel


# ----------------------------------------------------------------------------
# Wrapper
# ----------------------------------------------------------------------------

def double_conv(x, params):
    """x: (B, Cin, H, W) NCHW float32.  Returns (B, Cout, H, W) float32."""
    B, Cin, H, W = x.shape
    HW = H * W
    w1, w2 = params["w1"], params["w2"]                 # (Cmid,Cin,3,3),(Cout,Cmid,3,3)
    Cmid, Cout = w1.shape[0], w2.shape[0]
    eps = 1e-5

    # Inference-mode BN folded into per-channel scale (into weights) + shift.
    s1 = params["bn1_gamma"] * jax.lax.rsqrt(params["bn1_var"] + eps)
    t1 = (params["bn1_beta"] - params["bn1_mean"] * s1).reshape(Cmid, 1)
    s2 = params["bn2_gamma"] * jax.lax.rsqrt(params["bn2_var"] + eps)
    t2 = (params["bn2_beta"] - params["bn2_mean"] * s2).reshape(Cout, 1)

    # Pad conv1's input channels to a multiple of 8 sublanes (zero channels).
    Cin_p = max(8, ((Cin + 7) // 8) * 8)

    # Tap-major weights (9, Co, Ci) with BN scale folded, bf16 MXU operands.
    def prep_w(w, s, ci_pad):
        co, ci = w.shape[0], w.shape[1]
        wt = jnp.transpose(w, (2, 3, 0, 1)).reshape(9, co, ci) * s[None, :, None]
        if ci_pad > ci:
            wt = jnp.pad(wt, ((0, 0), (0, 0), (0, ci_pad - ci)))
        return wt.astype(jnp.bfloat16)

    w1t = prep_w(w1, s1, Cin_p)                          # (9, Cmid, Cin_p)
    w2t = prep_w(w2, s2, Cmid)                           # (9, Cout, Cmid)

    # NCHW -> (B, C, H*W): channels on sublanes, pixels on lanes (free reshape).
    xk = x.reshape(B, Cin, HW)
    if Cin_p > Cin:
        xk = jnp.pad(xk, ((0, 0), (0, Cin_p - Cin), (0, 0)))

    kernel = _make_doubleconv_kernel(H, W, Cin_p, Cmid, Cout)
    out = pl.pallas_call(
        kernel,
        out_shape=jax.ShapeDtypeStruct((B, Cout, HW), jnp.float32),
        grid=(B,),
        in_specs=[
            pl.BlockSpec((1, Cin_p, HW), lambda b: (b, 0, 0)),
            pl.BlockSpec((9, Cmid, Cin_p), lambda b: (0, 0, 0)),
            pl.BlockSpec((Cmid, 1), lambda b: (0, 0)),
            pl.BlockSpec((9, Cout, Cmid), lambda b: (0, 0, 0)),
            pl.BlockSpec((Cout, 1), lambda b: (0, 0)),
        ],
        out_specs=pl.BlockSpec((1, Cout, HW), lambda b: (b, 0, 0)),
        compiler_params=pltpu.CompilerParams(
            dimension_semantics=("parallel",)),
    )(xk, w1t, t1, w2t, t2)

    return out.reshape(B, Cout, H, W)                    # free reshape, no transpose


# ----------------------------------------------------------------------------
# Pure-JAX reference (exact f32 semantics of the PyTorch module, eval mode)
# ----------------------------------------------------------------------------

def _reference(x, params):
    eps = 1e-5

    def conv(z, w):
        return jax.lax.conv_general_dilated(
            z, w, (1, 1), ((1, 1), (1, 1)),
            dimension_numbers=("NCHW", "OIHW", "NCHW"))

    def bn(z, g, b, m, v):
        g, b, m, v = (a[None, :, None, None] for a in (g, b, m, v))
        return (z - m) * jax.lax.rsqrt(v + eps) * g + b

    h = jax.nn.relu(bn(conv(x, params["w1"]), params["bn1_gamma"],
                       params["bn1_beta"], params["bn1_mean"], params["bn1_var"]))
    return jax.nn.relu(bn(conv(h, params["w2"]), params["bn2_gamma"],
                          params["bn2_beta"], params["bn2_mean"], params["bn2_var"]))


# ----------------------------------------------------------------------------
# Main
# ----------------------------------------------------------------------------

if __name__ == "__main__":
    B, Cin, H, W = 2, 4, 16, 16
    Cmid = Cout = 32

    key = jax.random.PRNGKey(0)
    ks = jax.random.split(key, 12)
    x = jax.random.normal(ks[0], (B, Cin, H, W), jnp.float32)
    params = dict(
        w1=jax.random.normal(ks[1], (Cmid, Cin, 3, 3), jnp.float32) * 0.1,
        bn1_gamma=1.0 + 0.1 * jax.random.normal(ks[2], (Cmid,), jnp.float32),
        bn1_beta=0.1 * jax.random.normal(ks[3], (Cmid,), jnp.float32),
        bn1_mean=0.1 * jax.random.normal(ks[4], (Cmid,), jnp.float32),
        bn1_var=jax.random.uniform(ks[5], (Cmid,), jnp.float32, 0.5, 1.5),
        w2=jax.random.normal(ks[6], (Cout, Cmid, 3, 3), jnp.float32) * 0.1,
        bn2_gamma=1.0 + 0.1 * jax.random.normal(ks[7], (Cout,), jnp.float32),
        bn2_beta=0.1 * jax.random.normal(ks[8], (Cout,), jnp.float32),
        bn2_mean=0.1 * jax.random.normal(ks[9], (Cout,), jnp.float32),
        bn2_var=jax.random.uniform(ks[10], (Cout,), jnp.float32, 0.5, 1.5),
    )

    out = jax.jit(double_conv)(x, params)
    out = jax.block_until_ready(out)
    assert out.shape == (B, Cout, H, W) and out.dtype == jnp.float32

    ref = jax.block_until_ready(_reference(x, params))
    # Tolerance sized for bf16 MXU operands (f32 accumulate); structural bugs
    # would show O(0.5-1) errors, bf16 rounding is O(1e-2) worst case here.
    assert bool(jnp.allclose(out, ref, atol=5e-2, rtol=5e-2)), "mismatch vs reference"

    print("KERNEL_OK")
</pallas_src>

<mosaic_0001>
module attributes {stable_mosaic.version = 11 : i64} {
  func.func @kernel(%arg0: i32, %arg1: memref<1x8x256xf32, #tpu.memory_space<vmem>>, %arg2: memref<9x32x8xbf16, #tpu.memory_space<vmem>>, %arg3: memref<32x1xf32, #tpu.memory_space<vmem>>, %arg4: memref<9x32x32xbf16, #tpu.memory_space<vmem>>, %arg5: memref<32x1xf32, #tpu.memory_space<vmem>>, %arg6: memref<1x32x256xf32, #tpu.memory_space<vmem>>) attributes {dimension_semantics = [#tpu.dimension_semantics<parallel>], iteration_bounds = array<i64: 2>, scalar_prefetch = 0 : i64, scratch_operands = 0 : i64, tpu.core_type = #tpu.core_type<tc>, window_params = [{transform_indices = @transform_0, window_bounds = array<i64: 1, 8, 256>}, {pipeline_mode = #tpu.pipeline_mode<synchronous>, transform_indices = @transform_1, window_bounds = array<i64: 9, 32, 8>}, {pipeline_mode = #tpu.pipeline_mode<synchronous>, transform_indices = @transform_2, window_bounds = array<i64: 32, 1>}, {pipeline_mode = #tpu.pipeline_mode<synchronous>, transform_indices = @transform_3, window_bounds = array<i64: 9, 32, 32>}, {pipeline_mode = #tpu.pipeline_mode<synchronous>, transform_indices = @transform_4, window_bounds = array<i64: 32, 1>}, {transform_indices = @transform_5, window_bounds = array<i64: 1, 32, 256>}]} {
    %0 = tpu.iota {dimensions = array<i32: 1>} : vector<1x256xi32>
    %c16_i32 = arith.constant 16 : i32
    %c0_i32 = arith.constant 0 : i32
    %1 = arith.cmpi eq, %c16_i32, %c0_i32 : i32
    %c1_i32 = arith.constant 1 : i32
    %2 = arith.select %1, %c1_i32, %c16_i32 : i32
    %3 = vector.broadcast %2 : i32 to vector<1x256xi32>
    %4 = arith.remsi %0, %3 : vector<1x256xi32>
    %c0_i32_0 = arith.constant 0 : i32
    %5 = vector.broadcast %c0_i32_0 : i32 to vector<1x256xi32>
    %6 = arith.cmpi ne, %4, %5 : vector<1x256xi32>
    %c0_i32_1 = arith.constant 0 : i32
    %7 = vector.broadcast %c0_i32_1 : i32 to vector<1x256xi32>
    %8 = arith.cmpi slt, %4, %7 : vector<1x256xi32>
    %c0_i32_2 = arith.constant 0 : i32
    %9 = arith.cmpi slt, %2, %c0_i32_2 : i32
    %10 = vector.broadcast %9 : i1 to vector<1x256xi1>
    %11 = vector.broadcast %10 : vector<1x256xi1> to vector<1x256xi1>
    %12 = arith.xori %8, %11 : vector<1x256xi1>
    %13 = arith.andi %12, %6 : vector<1x256xi1>
    %14 = vector.broadcast %2 : i32 to vector<1x256xi32>
    %15 = arith.addi %4, %14 : vector<1x256xi32>
    %16 = arith.select %13, %15, %4 : vector<1x256xi1>, vector<1x256xi32>
    %c16_i32_3 = arith.constant 16 : i32
    %17 = vector.broadcast %c16_i32_3 : i32 to vector<1x256xi32>
    %18 = arith.cmpi sge, %0, %17 : vector<1x256xi32>
    %c240_i32 = arith.constant 240 : i32
    %19 = vector.broadcast %c240_i32 : i32 to vector<1x256xi32>
    %20 = arith.cmpi slt, %0, %19 : vector<1x256xi32>
    %c1_i32_4 = arith.constant 1 : i32
    %21 = vector.broadcast %c1_i32_4 : i32 to vector<1x256xi32>
    %22 = arith.cmpi sge, %16, %21 : vector<1x256xi32>
    %c14_i32 = arith.constant 14 : i32
    %23 = vector.broadcast %c14_i32 : i32 to vector<1x256xi32>
    %24 = arith.cmpi sle, %16, %23 : vector<1x256xi32>
    %25 = arith.andi %18, %22 : vector<1x256xi1>
    %26 = arith.andi %18, %24 : vector<1x256xi1>
    %27 = arith.andi %20, %22 : vector<1x256xi1>
    %28 = arith.andi %20, %24 : vector<1x256xi1>
    %c0 = arith.constant 0 : index
    %c0_5 = arith.constant 0 : index
    %c0_6 = arith.constant 0 : index
    %29 = vector.load %arg1[%c0, %c0_5, %c0_6] : memref<1x8x256xf32, #tpu.memory_space<vmem>>, vector<1x8x256xf32>
    %30 = vector.shape_cast %29 : vector<1x8x256xf32> to vector<8x256xf32>
    %cst = arith.constant 0.000000e+00 : f32
    %31 = vector.broadcast %cst : f32 to vector<32x256xf32>
    %c17_i32 = arith.constant 17 : i32
    %32 = tpu.dynamic_rotate %30 by %c17_i32 dim 1 : vector<8x256xf32>, i32 -> vector<8x256xf32>
    %cst_7 = arith.constant 0.000000e+00 : f32
    %33 = vector.shape_cast %25 : vector<1x256xi1> to vector<1x256xi1>
    %34 = vector.broadcast %33 : vector<1x256xi1> to vector<8x256xi1>
    %35 = vector.broadcast %cst_7 : f32 to vector<8x256xf32>
    %36 = arith.select %34, %32, %35 : vector<8x256xi1>, vector<8x256xf32>
    %c0_8 = arith.constant 0 : index
    %c0_9 = arith.constant 0 : index
    %c0_10 = arith.constant 0 : index
    %37 = vector.load %arg2[%c0_8, %c0_9, %c0_10] : memref<9x32x8xbf16, #tpu.memory_space<vmem>>, vector<1x32x8xbf16>
    %38 = vector.shape_cast %37 : vector<1x32x8xbf16> to vector<32x8xbf16>
    %39 = arith.truncf %36 : vector<8x256xf32> to vector<8x256xbf16>
    %cst_11 = arith.constant dense<0.000000e+00> : vector<32x256xf32>
    %40 = tpu.matmul %38, %39, %cst_11 {dimension_numbers = #tpu.dot_dimension_numbers<[1], [0], [0], [1], [0, 0, 1, 1], [], []>} : vector<32x8xbf16>, vector<8x256xbf16>, vector<32x256xf32> -> vector<32x256xf32>
    %41 = arith.addf %31, %40 : vector<32x256xf32>
    %c16_i32_12 = arith.constant 16 : i32
    %42 = tpu.dynamic_rotate %30 by %c16_i32_12 dim 1 : vector<8x256xf32>, i32 -> vector<8x256xf32>
    %cst_13 = arith.constant 0.000000e+00 : f32
    %43 = vector.shape_cast %18 : vector<1x256xi1> to vector<1x256xi1>
    %44 = vector.broadcast %43 : vector<1x256xi1> to vector<8x256xi1>
    %45 = vector.broadcast %cst_13 : f32 to vector<8x256xf32>
    %46 = arith.select %44, %42, %45 : vector<8x256xi1>, vector<8x256xf32>
    %c1 = arith.constant 1 : index
    %c0_14 = arith.constant 0 : index
    %c0_15 = arith.constant 0 : index
    %47 = vector.load %arg2[%c1, %c0_14, %c0_15] : memref<9x32x8xbf16, #tpu.memory_space<vmem>>, vector<1x32x8xbf16>
    %48 = vector.shape_cast %47 : vector<1x32x8xbf16> to vector<32x8xbf16>
    %49 = arith.truncf %46 : vector<8x256xf32> to vector<8x256xbf16>
    %cst_16 = arith.constant dense<0.000000e+00> : vector<32x256xf32>
    %50 = tpu.matmul %48, %49, %cst_16 {dimension_numbers = #tpu.dot_dimension_numbers<[1], [0], [0], [1], [0, 0, 1, 1], [], []>} : vector<32x8xbf16>, vector<8x256xbf16>, vector<32x256xf32> -> vector<32x256xf32>
    %51 = arith.addf %41, %50 : vector<32x256xf32>
    %c15_i32 = arith.constant 15 : i32
    %52 = tpu.dynamic_rotate %30 by %c15_i32 dim 1 : vector<8x256xf32>, i32 -> vector<8x256xf32>
    %cst_17 = arith.constant 0.000000e+00 : f32
    %53 = vector.shape_cast %26 : vector<1x256xi1> to vector<1x256xi1>
    %54 = vector.broadcast %53 : vector<1x256xi1> to vector<8x256xi1>
    %55 = vector.broadcast %cst_17 : f32 to vector<8x256xf32>
    %56 = arith.select %54, %52, %55 : vector<8x256xi1>, vector<8x256xf32>
    %c2 = arith.constant 2 : index
    %c0_18 = arith.constant 0 : index
    %c0_19 = arith.constant 0 : index
    %57 = vector.load %arg2[%c2, %c0_18, %c0_19] : memref<9x32x8xbf16, #tpu.memory_space<vmem>>, vector<1x32x8xbf16>
    %58 = vector.shape_cast %57 : vector<1x32x8xbf16> to vector<32x8xbf16>
    %59 = arith.truncf %56 : vector<8x256xf32> to vector<8x256xbf16>
    %cst_20 = arith.constant dense<0.000000e+00> : vector<32x256xf32>
    %60 = tpu.matmul %58, %59, %cst_20 {dimension_numbers = #tpu.dot_dimension_numbers<[1], [0], [0], [1], [0, 0, 1, 1], [], []>} : vector<32x8xbf16>, vector<8x256xbf16>, vector<32x256xf32> -> vector<32x256xf32>
    %61 = arith.addf %51, %60 : vector<32x256xf32>
    %c1_i32_21 = arith.constant 1 : i32
    %62 = tpu.dynamic_rotate %30 by %c1_i32_21 dim 1 : vector<8x256xf32>, i32 -> vector<8x256xf32>
    %cst_22 = arith.constant 0.000000e+00 : f32
    %63 = vector.shape_cast %22 : vector<1x256xi1> to vector<1x256xi1>
    %64 = vector.broadcast %63 : vector<1x256xi1> to vector<8x256xi1>
    %65 = vector.broadcast %cst_22 : f32 to vector<8x256xf32>
    %66 = arith.select %64, %62, %65 : vector<8x256xi1>, vector<8x256xf32>
    %c3 = arith.constant 3 : index
    %c0_23 = arith.constant 0 : index
    %c0_24 = arith.constant 0 : index
    %67 = vector.load %arg2[%c3, %c0_23, %c0_24] : memref<9x32x8xbf16, #tpu.memory_space<vmem>>, vector<1x32x8xbf16>
    %68 = vector.shape_cast %67 : vector<1x32x8xbf16> to vector<32x8xbf16>
    %69 = arith.truncf %66 : vector<8x256xf32> to vector<8x256xbf16>
    %cst_25 = arith.constant dense<0.000000e+00> : vector<32x256xf32>
    %70 = tpu.matmul %68, %69, %cst_25 {dimension_numbers = #tpu.dot_dimension_numbers<[1], [0], [0], [1], [0, 0, 1, 1], [], []>} : vector<32x8xbf16>, vector<8x256xbf16>, vector<32x256xf32> -> vector<32x256xf32>
    %71 = arith.addf %61, %70 : vector<32x256xf32>
    %c4 = arith.constant 4 : index
    %c0_26 = arith.constant 0 : index
    %c0_27 = arith.constant 0 : index
    %72 = vector.load %arg2[%c4, %c0_26, %c0_27] : memref<9x32x8xbf16, #tpu.memory_space<vmem>>, vector<1x32x8xbf16>
    %73 = vector.shape_cast %72 : vector<1x32x8xbf16> to vector<32x8xbf16>
    %74 = arith.truncf %30 : vector<8x256xf32> to vector<8x256xbf16>
    %cst_28 = arith.constant dense<0.000000e+00> : vector<32x256xf32>
    %75 = tpu.matmul %73, %74, %cst_28 {dimension_numbers = #tpu.dot_dimension_numbers<[1], [0], [0], [1], [0, 0, 1, 1], [], []>} : vector<32x8xbf16>, vector<8x256xbf16>, vector<32x256xf32> -> vector<32x256xf32>
    %76 = arith.addf %71, %75 : vector<32x256xf32>
    %c255_i32 = arith.constant 255 : i32
    %77 = tpu.dynamic_rotate %30 by %c255_i32 dim 1 : vector<8x256xf32>, i32 -> vector<8x256xf32>
    %cst_29 = arith.constant 0.000000e+00 : f32
    %78 = vector.shape_cast %24 : vector<1x256xi1> to vector<1x256xi1>
    %79 = vector.broadcast %78 : vector<1x256xi1> to vector<8x256xi1>
    %80 = vector.broadcast %cst_29 : f32 to vector<8x256xf32>
    %81 = arith.select %79, %77, %80 : vector<8x256xi1>, vector<8x256xf32>
    %c5 = arith.constant 5 : index
    %c0_30 = arith.constant 0 : index
    %c0_31 = arith.constant 0 : index
    %82 = vector.load %arg2[%c5, %c0_30, %c0_31] : memref<9x32x8xbf16, #tpu.memory_space<vmem>>, vector<1x32x8xbf16>
    %83 = vector.shape_cast %82 : vector<1x32x8xbf16> to vector<32x8xbf16>
    %84 = arith.truncf %81 : vector<8x256xf32> to vector<8x256xbf16>
    %cst_32 = arith.constant dense<0.000000e+00> : vector<32x256xf32>
    %85 = tpu.matmul %83, %84, %cst_32 {dimension_numbers = #tpu.dot_dimension_numbers<[1], [0], [0], [1], [0, 0, 1, 1], [], []>} : vector<32x8xbf16>, vector<8x256xbf16>, vector<32x256xf32> -> vector<32x256xf32>
    %86 = arith.addf %76, %85 : vector<32x256xf32>
    %c241_i32 = arith.constant 241 : i32
    %87 = tpu.dynamic_rotate %30 by %c241_i32 dim 1 : vector<8x256xf32>, i32 -> vector<8x256xf32>
    %cst_33 = arith.constant 0.000000e+00 : f32
    %88 = vector.shape_cast %27 : vector<1x256xi1> to vector<1x256xi1>
    %89 = vector.broadcast %88 : vector<1x256xi1> to vector<8x256xi1>
    %90 = vector.broadcast %cst_33 : f32 to vector<8x256xf32>
    %91 = arith.select %89, %87, %90 : vector<8x256xi1>, vector<8x256xf32>
    %c6 = arith.constant 6 : index
    %c0_34 = arith.constant 0 : index
    %c0_35 = arith.constant 0 : index
    %92 = vector.load %arg2[%c6, %c0_34, %c0_35] : memref<9x32x8xbf16, #tpu.memory_space<vmem>>, vector<1x32x8xbf16>
    %93 = vector.shape_cast %92 : vector<1x32x8xbf16> to vector<32x8xbf16>
    %94 = arith.truncf %91 : vector<8x256xf32> to vector<8x256xbf16>
    %cst_36 = arith.constant dense<0.000000e+00> : vector<32x256xf32>
    %95 = tpu.matmul %93, %94, %cst_36 {dimension_numbers = #tpu.dot_dimension_numbers<[1], [0], [0], [1], [0, 0, 1, 1], [], []>} : vector<32x8xbf16>, vector<8x256xbf16>, vector<32x256xf32> -> vector<32x256xf32>
    %96 = arith.addf %86, %95 : vector<32x256xf32>
    %c240_i32_37 = arith.constant 240 : i32
    %97 = tpu.dynamic_rotate %30 by %c240_i32_37 dim 1 : vector<8x256xf32>, i32 -> vector<8x256xf32>
    %cst_38 = arith.constant 0.000000e+00 : f32
    %98 = vector.shape_cast %20 : vector<1x256xi1> to vector<1x256xi1>
    %99 = vector.broadcast %98 : vector<1x256xi1> to vector<8x256xi1>
    %100 = vector.broadcast %cst_38 : f32 to vector<8x256xf32>
    %101 = arith.select %99, %97, %100 : vector<8x256xi1>, vector<8x256xf32>
    %c7 = arith.constant 7 : index
    %c0_39 = arith.constant 0 : index
    %c0_40 = arith.constant 0 : index
    %102 = vector.load %arg2[%c7, %c0_39, %c0_40] : memref<9x32x8xbf16, #tpu.memory_space<vmem>>, vector<1x32x8xbf16>
    %103 = vector.shape_cast %102 : vector<1x32x8xbf16> to vector<32x8xbf16>
    %104 = arith.truncf %101 : vector<8x256xf32> to vector<8x256xbf16>
    %cst_41 = arith.constant dense<0.000000e+00> : vector<32x256xf32>
    %105 = tpu.matmul %103, %104, %cst_41 {dimension_numbers = #tpu.dot_dimension_numbers<[1], [0], [0], [1], [0, 0, 1, 1], [], []>} : vector<32x8xbf16>, vector<8x256xbf16>, vector<32x256xf32> -> vector<32x256xf32>
    %106 = arith.addf %96, %105 : vector<32x256xf32>
    %c239_i32 = arith.constant 239 : i32
    %107 = tpu.dynamic_rotate %30 by %c239_i32 dim 1 : vector<8x256xf32>, i32 -> vector<8x256xf32>
    %cst_42 = arith.constant 0.000000e+00 : f32
    %108 = vector.shape_cast %28 : vector<1x256xi1> to vector<1x256xi1>
    %109 = vector.broadcast %108 : vector<1x256xi1> to vector<8x256xi1>
    %110 = vector.broadcast %cst_42 : f32 to vector<8x256xf32>
    %111 = arith.select %109, %107, %110 : vector<8x256xi1>, vector<8x256xf32>
    %c8 = arith.constant 8 : index
    %c0_43 = arith.constant 0 : index
    %c0_44 = arith.constant 0 : index
    %112 = vector.load %arg2[%c8, %c0_43, %c0_44] : memref<9x32x8xbf16, #tpu.memory_space<vmem>>, vector<1x32x8xbf16>
    %113 = vector.shape_cast %112 : vector<1x32x8xbf16> to vector<32x8xbf16>
    %114 = arith.truncf %111 : vector<8x256xf32> to vector<8x256xbf16>
    %cst_45 = arith.constant dense<0.000000e+00> : vector<32x256xf32>
    %115 = tpu.matmul %113, %114, %cst_45 {dimension_numbers = #tpu.dot_dimension_numbers<[1], [0], [0], [1], [0, 0, 1, 1], [], []>} : vector<32x8xbf16>, vector<8x256xbf16>, vector<32x256xf32> -> vector<32x256xf32>
    %116 = arith.addf %106, %115 : vector<32x256xf32>
    %c0_46 = arith.constant 0 : index
    %c0_47 = arith.constant 0 : index
    %117 = vector.load %arg3[%c0_46, %c0_47] : memref<32x1xf32, #tpu.memory_space<vmem>>, vector<32x1xf32>
    %118 = vector.broadcast %117 : vector<32x1xf32> to vector<32x256xf32>
    %119 = arith.addf %116, %118 : vector<32x256xf32>
    %cst_48 = arith.constant 0.000000e+00 : f32
    %120 = vector.broadcast %cst_48 : f32 to vector<32x256xf32>
    %121 = arith.maximumf %119, %120 : vector<32x256xf32>
    %cst_49 = arith.constant 0.000000e+00 : f32
    %122 = vector.broadcast %cst_49 : f32 to vector<32x256xf32>
    %c17_i32_50 = arith.constant 17 : i32
    %123 = tpu.dynamic_rotate %121 by %c17_i32_50 dim 1 : vector<32x256xf32>, i32 -> vector<32x256xf32>
    %cst_51 = arith.constant 0.000000e+00 : f32
    %124 = vector.shape_cast %25 : vector<1x256xi1> to vector<1x256xi1>
    %125 = vector.broadcast %124 : vector<1x256xi1> to vector<32x256xi1>
    %126 = vector.broadcast %cst_51 : f32 to vector<32x256xf32>
    %127 = arith.select %125, %123, %126 : vector<32x256xi1>, vector<32x256xf32>
    %c0_52 = arith.constant 0 : index
    %c0_53 = arith.constant 0 : index
    %c0_54 = arith.constant 0 : index
    %128 = vector.load %arg4[%c0_52, %c0_53, %c0_54] : memref<9x32x32xbf16, #tpu.memory_space<vmem>>, vector<1x32x32xbf16>
    %129 = vector.shape_cast %128 : vector<1x32x32xbf16> to vector<32x32xbf16>
    %130 = arith.truncf %127 : vector<32x256xf32> to vector<32x256xbf16>
    %cst_55 = arith.constant dense<0.000000e+00> : vector<32x256xf32>
    %131 = tpu.matmul %129, %130, %cst_55 {dimension_numbers = #tpu.dot_dimension_numbers<[1], [0], [0], [1], [0, 0, 1, 1], [], []>} : vector<32x32xbf16>, vector<32x256xbf16>, vector<32x256xf32> -> vector<32x256xf32>
    %132 = arith.addf %122, %131 : vector<32x256xf32>
    %c16_i32_56 = arith.constant 16 : i32
    %133 = tpu.dynamic_rotate %121 by %c16_i32_56 dim 1 : vector<32x256xf32>, i32 -> vector<32x256xf32>
    %cst_57 = arith.constant 0.000000e+00 : f32
    %134 = vector.shape_cast %18 : vector<1x256xi1> to vector<1x256xi1>
    %135 = vector.broadcast %134 : vector<1x256xi1> to vector<32x256xi1>
    %136 = vector.broadcast %cst_57 : f32 to vector<32x256xf32>
    %137 = arith.select %135, %133, %136 : vector<32x256xi1>, vector<32x256xf32>
    %c1_58 = arith.constant 1 : index
    %c0_59 = arith.constant 0 : index
    %c0_60 = arith.constant 0 : index
    %138 = vector.load %arg4[%c1_58, %c0_59, %c0_60] : memref<9x32x32xbf16, #tpu.memory_space<vmem>>, vector<1x32x32xbf16>
    %139 = vector.shape_cast %138 : vector<1x32x32xbf16> to vector<32x32xbf16>
    %140 = arith.truncf %137 : vector<32x256xf32> to vector<32x256xbf16>
    %cst_61 = arith.constant dense<0.000000e+00> : vector<32x256xf32>
    %141 = tpu.matmul %139, %140, %cst_61 {dimension_numbers = #tpu.dot_dimension_numbers<[1], [0], [0], [1], [0, 0, 1, 1], [], []>} : vector<32x32xbf16>, vector<32x256xbf16>, vector<32x256xf32> -> vector<32x256xf32>
    %142 = arith.addf %132, %141 : vector<32x256xf32>
    %c15_i32_62 = arith.constant 15 : i32
    %143 = tpu.dynamic_rotate %121 by %c15_i32_62 dim 1 : vector<32x256xf32>, i32 -> vector<32x256xf32>
    %cst_63 = arith.constant 0.000000e+00 : f32
    %144 = vector.shape_cast %26 : vector<1x256xi1> to vector<1x256xi1>
    %145 = vector.broadcast %144 : vector<1x256xi1> to vector<32x256xi1>
    %146 = vector.broadcast %cst_63 : f32 to vector<32x256xf32>
    %147 = arith.select %145, %143, %146 : vector<32x256xi1>, vector<32x256xf32>
    %c2_64 = arith.constant 2 : index
    %c0_65 = arith.constant 0 : index
    %c0_66 = arith.constant 0 : index
    %148 = vector.load %arg4[%c2_64, %c0_65, %c0_66] : memref<9x32x32xbf16, #tpu.memory_space<vmem>>, vector<1x32x32xbf16>
    %149 = vector.shape_cast %148 : vector<1x32x32xbf16> to vector<32x32xbf16>
    %150 = arith.truncf %147 : vector<32x256xf32> to vector<32x256xbf16>
    %cst_67 = arith.constant dense<0.000000e+00> : vector<32x256xf32>
    %151 = tpu.matmul %149, %150, %cst_67 {dimension_numbers = #tpu.dot_dimension_numbers<[1], [0], [0], [1], [0, 0, 1, 1], [], []>} : vector<32x32xbf16>, vector<32x256xbf16>, vector<32x256xf32> -> vector<32x256xf32>
    %152 = arith.addf %142, %151 : vector<32x256xf32>
    %c1_i32_68 = arith.constant 1 : i32
    %153 = tpu.dynamic_rotate %121 by %c1_i32_68 dim 1 : vector<32x256xf32>, i32 -> vector<32x256xf32>
    %cst_69 = arith.constant 0.000000e+00 : f32
    %154 = vector.shape_cast %22 : vector<1x256xi1> to vector<1x256xi1>
    %155 = vector.broadcast %154 : vector<1x256xi1> to vector<32x256xi1>
    %156 = vector.broadcast %cst_69 : f32 to vector<32x256xf32>
    %157 = arith.select %155, %153, %156 : vector<32x256xi1>, vector<32x256xf32>
    %c3_70 = arith.constant 3 : index
    %c0_71 = arith.constant 0 : index
    %c0_72 = arith.constant 0 : index
    %158 = vector.load %arg4[%c3_70, %c0_71, %c0_72] : memref<9x32x32xbf16, #tpu.memory_space<vmem>>, vector<1x32x32xbf16>
    %159 = vector.shape_cast %158 : vector<1x32x32xbf16> to vector<32x32xbf16>
    %160 = arith.truncf %157 : vector<32x256xf32> to vector<32x256xbf16>
    %cst_73 = arith.constant dense<0.000000e+00> : vector<32x256xf32>
    %161 = tpu.matmul %159, %160, %cst_73 {dimension_numbers = #tpu.dot_dimension_numbers<[1], [0], [0], [1], [0, 0, 1, 1], [], []>} : vector<32x32xbf16>, vector<32x256xbf16>, vector<32x256xf32> -> vector<32x256xf32>
    %162 = arith.addf %152, %161 : vector<32x256xf32>
    %c4_74 = arith.constant 4 : index
    %c0_75 = arith.constant 0 : index
    %c0_76 = arith.constant 0 : index
    %163 = vector.load %arg4[%c4_74, %c0_75, %c0_76] : memref<9x32x32xbf16, #tpu.memory_space<vmem>>, vector<1x32x32xbf16>
    %164 = vector.shape_cast %163 : vector<1x32x32xbf16> to vector<32x32xbf16>
    %165 = arith.truncf %121 : vector<32x256xf32> to vector<32x256xbf16>
    %cst_77 = arith.constant dense<0.000000e+00> : vector<32x256xf32>
    %166 = tpu.matmul %164, %165, %cst_77 {dimension_numbers = #tpu.dot_dimension_numbers<[1], [0], [0], [1], [0, 0, 1, 1], [], []>} : vector<32x32xbf16>, vector<32x256xbf16>, vector<32x256xf32> -> vector<32x256xf32>
    %167 = arith.addf %162, %166 : vector<32x256xf32>
    %c255_i32_78 = arith.constant 255 : i32
    %168 = tpu.dynamic_rotate %121 by %c255_i32_78 dim 1 : vector<32x256xf32>, i32 -> vector<32x256xf32>
    %cst_79 = arith.constant 0.000000e+00 : f32
    %169 = vector.shape_cast %24 : vector<1x256xi1> to vector<1x256xi1>
    %170 = vector.broadcast %169 : vector<1x256xi1> to vector<32x256xi1>
    %171 = vector.broadcast %cst_79 : f32 to vector<32x256xf32>
    %172 = arith.select %170, %168, %171 : vector<32x256xi1>, vector<32x256xf32>
    %c5_80 = arith.constant 5 : index
    %c0_81 = arith.constant 0 : index
    %c0_82 = arith.constant 0 : index
    %173 = vector.load %arg4[%c5_80, %c0_81, %c0_82] : memref<9x32x32xbf16, #tpu.memory_space<vmem>>, vector<1x32x32xbf16>
    %174 = vector.shape_cast %173 : vector<1x32x32xbf16> to vector<32x32xbf16>
    %175 = arith.truncf %172 : vector<32x256xf32> to vector<32x256xbf16>
    %cst_83 = arith.constant dense<0.000000e+00> : vector<32x256xf32>
    %176 = tpu.matmul %174, %175, %cst_83 {dimension_numbers = #tpu.dot_dimension_numbers<[1], [0], [0], [1], [0, 0, 1, 1], [], []>} : vector<32x32xbf16>, vector<32x256xbf16>, vector<32x256xf32> -> vector<32x256xf32>
    %177 = arith.addf %167, %176 : vector<32x256xf32>
    %c241_i32_84 = arith.constant 241 : i32
    %178 = tpu.dynamic_rotate %121 by %c241_i32_84 dim 1 : vector<32x256xf32>, i32 -> vector<32x256xf32>
    %cst_85 = arith.constant 0.000000e+00 : f32
    %179 = vector.shape_cast %27 : vector<1x256xi1> to vector<1x256xi1>
    %180 = vector.broadcast %179 : vector<1x256xi1> to vector<32x256xi1>
    %181 = vector.broadcast %cst_85 : f32 to vector<32x256xf32>
    %182 = arith.select %180, %178, %181 : vector<32x256xi1>, vector<32x256xf32>
    %c6_86 = arith.constant 6 : index
    %c0_87 = arith.constant 0 : index
    %c0_88 = arith.constant 0 : index
    %183 = vector.load %arg4[%c6_86, %c0_87, %c0_88] : memref<9x32x32xbf16, #tpu.memory_space<vmem>>, vector<1x32x32xbf16>
    %184 = vector.shape_cast %183 : vector<1x32x32xbf16> to vector<32x32xbf16>
    %185 = arith.truncf %182 : vector<32x256xf32> to vector<32x256xbf16>
    %cst_89 = arith.constant dense<0.000000e+00> : vector<32x256xf32>
    %186 = tpu.matmul %184, %185, %cst_89 {dimension_numbers = #tpu.dot_dimension_numbers<[1], [0], [0], [1], [0, 0, 1, 1], [], []>} : vector<32x32xbf16>, vector<32x256xbf16>, vector<32x256xf32> -> vector<32x256xf32>
    %187 = arith.addf %177, %186 : vector<32x256xf32>
    %c240_i32_90 = arith.constant 240 : i32
    %188 = tpu.dynamic_rotate %121 by %c240_i32_90 dim 1 : vector<32x256xf32>, i32 -> vector<32x256xf32>
    %cst_91 = arith.constant 0.000000e+00 : f32
    %189 = vector.shape_cast %20 : vector<1x256xi1> to vector<1x256xi1>
    %190 = vector.broadcast %189 : vector<1x256xi1> to vector<32x256xi1>
    %191 = vector.broadcast %cst_91 : f32 to vector<32x256xf32>
    %192 = arith.select %190, %188, %191 : vector<32x256xi1>, vector<32x256xf32>
    %c7_92 = arith.constant 7 : index
    %c0_93 = arith.constant 0 : index
    %c0_94 = arith.constant 0 : index
    %193 = vector.load %arg4[%c7_92, %c0_93, %c0_94] : memref<9x32x32xbf16, #tpu.memory_space<vmem>>, vector<1x32x32xbf16>
    %194 = vector.shape_cast %193 : vector<1x32x32xbf16> to vector<32x32xbf16>
    %195 = arith.truncf %192 : vector<32x256xf32> to vector<32x256xbf16>
    %cst_95 = arith.constant dense<0.000000e+00> : vector<32x256xf32>
    %196 = tpu.matmul %194, %195, %cst_95 {dimension_numbers = #tpu.dot_dimension_numbers<[1], [0], [0], [1], [0, 0, 1, 1], [], []>} : vector<32x32xbf16>, vector<32x256xbf16>, vector<32x256xf32> -> vector<32x256xf32>
    %197 = arith.addf %187, %196 : vector<32x256xf32>
    %c239_i32_96 = arith.constant 239 : i32
    %198 = tpu.dynamic_rotate %121 by %c239_i32_96 dim 1 : vector<32x256xf32>, i32 -> vector<32x256xf32>
    %cst_97 = arith.constant 0.000000e+00 : f32
    %199 = vector.shape_cast %28 : vector<1x256xi1> to vector<1x256xi1>
    %200 = vector.broadcast %199 : vector<1x256xi1> to vector<32x256xi1>
    %201 = vector.broadcast %cst_97 : f32 to vector<32x256xf32>
    %202 = arith.select %200, %198, %201 : vector<32x256xi1>, vector<32x256xf32>
    %c8_98 = arith.constant 8 : index
    %c0_99 = arith.constant 0 : index
    %c0_100 = arith.constant 0 : index
    %203 = vector.load %arg4[%c8_98, %c0_99, %c0_100] : memref<9x32x32xbf16, #tpu.memory_space<vmem>>, vector<1x32x32xbf16>
    %204 = vector.shape_cast %203 : vector<1x32x32xbf16> to vector<32x32xbf16>
    %205 = arith.truncf %202 : vector<32x256xf32> to vector<32x256xbf16>
    %cst_101 = arith.constant dense<0.000000e+00> : vector<32x256xf32>
    %206 = tpu.matmul %204, %205, %cst_101 {dimension_numbers = #tpu.dot_dimension_numbers<[1], [0], [0], [1], [0, 0, 1, 1], [], []>} : vector<32x32xbf16>, vector<32x256xbf16>, vector<32x256xf32> -> vector<32x256xf32>
    %207 = arith.addf %197, %206 : vector<32x256xf32>
    %c0_102 = arith.constant 0 : index
    %c0_103 = arith.constant 0 : index
    %208 = vector.load %arg5[%c0_102, %c0_103] : memref<32x1xf32, #tpu.memory_space<vmem>>, vector<32x1xf32>
    %209 = vector.broadcast %208 : vector<32x1xf32> to vector<32x256xf32>
    %210 = arith.addf %207, %209 : vector<32x256xf32>
    %cst_104 = arith.constant 0.000000e+00 : f32
    %211 = vector.broadcast %cst_104 : f32 to vector<32x256xf32>
    %212 = arith.maximumf %210, %211 : vector<32x256xf32>
    %c0_105 = arith.constant 0 : index
    %c0_106 = arith.constant 0 : index
    %c0_107 = arith.constant 0 : index
    %213 = vector.load %arg6[%c0_105, %c0_106, %c0_107] : memref<1x32x256xf32, #tpu.memory_space<vmem>>, vector<1x32x256xf32>
    %214 = vector.shape_cast %213 : vector<1x32x256xf32> to vector<32x256xf32>
    %215 = vector.shape_cast %212 : vector<32x256xf32> to vector<1x32x256xf32>
    tpu.vector_store %arg6[%c0_105, %c0_106, %c0_107], %215 {strides = array<i32>} : memref<1x32x256xf32, #tpu.memory_space<vmem>>, vector<1x32x256xf32>,
    return
  }
  func.func @transform_0(%arg0: i32) -> (i32, i32, i32) {
    %c0_i32 = arith.constant 0 : i32
    %c0_i32_0 = arith.constant 0 : i32
    %c0_i32_1 = arith.constant 0 : i32
    return %arg0, %c0_i32, %c0_i32_0 : i32, i32, i32
  }
  func.func @transform_1(%arg0: i32) -> (i32, i32, i32) {
    %c0_i32 = arith.constant 0 : i32
    %c0_i32_0 = arith.constant 0 : i32
    %c0_i32_1 = arith.constant 0 : i32
    %c0_i32_2 = arith.constant 0 : i32
    return %c0_i32, %c0_i32_0, %c0_i32_1 : i32, i32, i32
  }
  func.func @transform_2(%arg0: i32) -> (i32, i32) {
    %c0_i32 = arith.constant 0 : i32
    %c0_i32_0 = arith.constant 0 : i32
    %c0_i32_1 = arith.constant 0 : i32
    return %c0_i32, %c0_i32_0 : i32, i32
  }
  func.func @transform_3(%arg0: i32) -> (i32, i32, i32) {
    %c0_i32 = arith.constant 0 : i32
    %c0_i32_0 = arith.constant 0 : i32
    %c0_i32_1 = arith.constant 0 : i32
    %c0_i32_2 = arith.constant 0 : i32
    return %c0_i32, %c0_i32_0, %c0_i32_1 : i32, i32, i32
  }
  func.func @transform_4(%arg0: i32) -> (i32, i32) {
    %c0_i32 = arith.constant 0 : i32
    %c0_i32_0 = arith.constant 0 : i32
    %c0_i32_1 = arith.constant 0 : i32
    return %c0_i32, %c0_i32_0 : i32, i32
  }
  func.func @transform_5(%arg0: i32) -> (i32, i32, i32) {
    %c0_i32 = arith.constant 0 : i32
    %c0_i32_0 = arith.constant 0 : i32
    %c0_i32_1 = arith.constant 0 : i32
    return %arg0, %c0_i32, %c0_i32_0 : i32, i32, i32
  }
}

</mosaic_0001>

<llo_original>
// kernel: double_conv.1
$region0: #{double_conv.1}
  #allocation0 [shape = 'u32[]', space=smem, size = 0x4, offset = 0x4, fixed_abs, tag = 'smem constant byte address 0x4 - core index']
  #allocation1 [shape = 'u32[144,128]{1,0:T(1,128)}', space=vmem, size = 0x12000, scoped, tag = 'internal scratch']
  %s0 = inlined_call_operand.vmem [shape: f32[2,8,256], index: 0, kind: input, shape index: {}]
  %s1 = inlined_call_operand.vmem [shape: bf16[9,32,8], index: 1, kind: input, shape index: {}]
  %s2 = inlined_call_operand.vmem [shape: f32[32,1], index: 2, kind: input, shape index: {}]
  %s3 = inlined_call_operand.vmem [shape: bf16[9,32,32], index: 3, kind: input, shape index: {}]
  %s4 = inlined_call_operand.vmem [shape: f32[32,1], index: 4, kind: input, shape index: {}]
  %s5 = inlined_call_operand.vmem [shape: f32[2,32,256], index: 5, kind: output, shape index: {}]
  %s6 = sld [smem:[#allocation0]]
  $region53: #{double_conv.1} parent=0
    _
  %s8 = ssub.s32 1, %s6
  %s9 = scalar_select 0, %s8, %s6
  loop: start=0, step=1, limit=4
  $region2: #{double_conv.1} parent=0 // loop_pre_header
    _
  $region3: #{double_conv.1} parent=0 // loop_header
    %s11 = sphi 0, %s15
    %p12 = scmp.ge.s32.totalorder %s11, 4
    %s21 = sphi 0, %s23
    %s24 = sphi 0, %s21
    %s25 = sphi 0, %s24
    %s41 = sphi 0, %s25
    %s45 = sphi 0, %s45
    %s47 = sphi 0, %s45
    %s48 = sphi 0, %s47
    %s62 = sphi 0, %s48
    %s66 = sphi 0, %s66
    %s68 = sphi 0, %s66
    %s69 = sphi 0, %s68
    %s83 = sphi 0, %s69
    %s87 = sphi 0, %s87
    %s89 = sphi 0, %s87
    %s90 = sphi 0, %s89
    %s104 = sphi 0, %s90
    %s108 = sphi 0, %s108
    %s110 = sphi 0, %s108
    %s111 = sphi 0, %s110
    %s125 = sphi 0, %s111
    %s131 = sphi 0, %s133
    %s134 = sphi 0, %s131
    %s135 = sphi 0, %s134
    %s151 = sphi 0, %s135
  $region4: #{double_conv.1} parent=0 // loop_header_branch
    %14 = sbr.rel (%p12) target = $region8
  $region5: #{double_conv.1} parent=0 // loop_body
    %s16 = ssub.s32 %s11, 1
    %s17 = ssub.s32 %s11, 2
    %s18 = sadd.s32 %s11, 1
    %s19 = ssub.s32 %s11, %s18
    %p20 = scmp.eq.s32.totalorder %s19, 0
    %s22 = sadd.s32 %s21, 1
    %s23 = scalar_select %p20, %s21, %s22
    %p26 = pneg %p20
    %p27 = scmp.eq.s32.totalorder %s11, 1
    %p28 = por %p26, %p27
    %p29 = scmp.ne.s32.totalorder %s21, %s24
    %p30 = scmp.eq.s32.totalorder %s11, 0
    %p31 = por %p29, %p30
    %p32 = scmp.ne.s32.totalorder %s21, %s24
    %p33 = scmp.eq.s32.totalorder %s16, 1
    %p34 = por %p32, %p33
    %p35 = scmp.ne.s32.totalorder %s24, %s25
    %p36 = scmp.eq.s32.totalorder %s16, 0
    %p37 = por %p35, %p36
    %p38 = scmp.ne.s32.totalorder %s24, %s25
    %p39 = scmp.eq.s32.totalorder %s17, 1
    %p40 = por %p38, %p39
    %p42 = scmp.ne.s32.totalorder %s25, %s41
    %p43 = scmp.eq.s32.totalorder %s17, 0
    %p44 = por %p42, %p43
    %s46 = sadd.s32 %s45, 1
    %p49 = scmp.eq.s32.totalorder %s11, 1
    %p50 = scmp.ne.s32.totalorder %s45, %s47
    %p51 = scmp.eq.s32.totalorder %s11, 0
    %p52 = por %p50, %p51
    %p53 = scmp.ne.s32.totalorder %s45, %s47
    %p54 = scmp.eq.s32.totalorder %s16, 1
    %p55 = por %p53, %p54
    %p56 = scmp.ne.s32.totalorder %s47, %s48
    %p57 = scmp.eq.s32.totalorder %s16, 0
    %p58 = por %p56, %p57
    %p59 = scmp.ne.s32.totalorder %s47, %s48
    %p60 = scmp.eq.s32.totalorder %s17, 1
    %p61 = por %p59, %p60
    %p63 = scmp.ne.s32.totalorder %s48, %s62
    %p64 = scmp.eq.s32.totalorder %s17, 0
    %p65 = por %p63, %p64
    %s67 = sadd.s32 %s66, 1
    %p70 = scmp.eq.s32.totalorder %s11, 1
    %p71 = scmp.ne.s32.totalorder %s66, %s68
    %p72 = scmp.eq.s32.totalorder %s11, 0
    %p73 = por %p71, %p72
    %p74 = scmp.ne.s32.totalorder %s66, %s68
    %p75 = scmp.eq.s32.totalorder %s16, 1
    %p76 = por %p74, %p75
    %p77 = scmp.ne.s32.totalorder %s68, %s69
    %p78 = scmp.eq.s32.totalorder %s16, 0
    %p79 = por %p77, %p78
    %p80 = scmp.ne.s32.totalorder %s68, %s69
    %p81 = scmp.eq.s32.totalorder %s17, 1
    %p82 = por %p80, %p81
    %p84 = scmp.ne.s32.totalorder %s69, %s83
    %p85 = scmp.eq.s32.totalorder %s17, 0
    %p86 = por %p84, %p85
    %s88 = sadd.s32 %s87, 1
    %p91 = scmp.eq.s32.totalorder %s11, 1
    %p92 = scmp.ne.s32.totalorder %s87, %s89
    %p93 = scmp.eq.s32.totalorder %s11, 0
    %p94 = por %p92, %p93
    %p95 = scmp.ne.s32.totalorder %s87, %s89
    %p96 = scmp.eq.s32.totalorder %s16, 1
    %p97 = por %p95, %p96
    %p98 = scmp.ne.s32.totalorder %s89, %s90
    %p99 = scmp.eq.s32.totalorder %s16, 0
    %p100 = por %p98, %p99
    %p101 = scmp.ne.s32.totalorder %s89, %s90
    %p102 = scmp.eq.s32.totalorder %s17, 1
    %p103 = por %p101, %p102
    %p105 = scmp.ne.s32.totalorder %s90, %s104
    %p106 = scmp.eq.s32.totalorder %s17, 0
    %p107 = por %p105, %p106
    %s109 = sadd.s32 %s108, 1
    %p112 = scmp.eq.s32.totalorder %s11, 1
    %p113 = scmp.ne.s32.totalorder %s108, %s110
    %p114 = scmp.eq.s32.totalorder %s11, 0
    %p115 = por %p113, %p114
    %p116 = scmp.ne.s32.totalorder %s108, %s110
    %p117 = scmp.eq.s32.totalorder %s16, 1
    %p118 = por %p116, %p117
    %p119 = scmp.ne.s32.totalorder %s110, %s111
    %p120 = scmp.eq.s32.totalorder %s16, 0
    %p121 = por %p119, %p120
    %p122 = scmp.ne.s32.totalorder %s110, %s111
    %p123 = scmp.eq.s32.totalorder %s17, 1
    %p124 = por %p122, %p123
    %p126 = scmp.ne.s32.totalorder %s111, %s125
    %p127 = scmp.eq.s32.totalorder %s17, 0
    %p128 = por %p126, %p127
    %s129 = ssub.s32 %s11, %s18
    %p130 = scmp.eq.s32.totalorder %s129, 0
    %s132 = sadd.s32 %s131, 1
    %s133 = scalar_select %p130, %s131, %s132
    %p136 = pneg %p130
    %p137 = scmp.eq.s32.totalorder %s11, 1
    %p138 = por %p136, %p137
    %p139 = scmp.ne.s32.totalorder %s131, %s134
    %p140 = scmp.eq.s32.totalorder %s11, 0
    %p141 = por %p139, %p140
    %p142 = scmp.ne.s32.totalorder %s131, %s134
    %p143 = scmp.eq.s32.totalorder %s16, 1
    %p144 = por %p142, %p143
    %p145 = scmp.ne.s32.totalorder %s134, %s135
    %p146 = scmp.eq.s32.totalorder %s16, 0
    %p147 = por %p145, %p146
    %p148 = scmp.ne.s32.totalorder %s134, %s135
    %p149 = scmp.eq.s32.totalorder %s17, 1
    %p150 = por %p148, %p149
    %p152 = scmp.ne.s32.totalorder %s135, %s151
    %p153 = scmp.eq.s32.totalorder %s17, 0
    %p154 = por %p152, %p153
    %p155 = scmp.le.s32.totalorder 1, %s11
    %p156 = scmp.lt.s32.totalorder %s11, 3
    %p157 = pnand %p155, %p156
    %p158 = pneg %p157
    // Predicated region
    $region9: #{double_conv.1} parent=5 // pred_check
      _
    $region10: #{double_conv.1} parent=5 // pred_check_branch
      %160 = sbr.rel (%p157) target = $region12
    $region11: #{double_conv.1} parent=5 // pred_region
      %s161 = ssub.s32 %s11, 1
      // Predicated region
      $region13: #{double_conv.1} parent=11 // pred_check
        %p162 = pneg %p58
      $region14: #{double_conv.1} parent=11 // pred_check_branch
        %164 = sbr.rel (%p162) target = $region16
      $region15: #{double_conv.1} parent=11 // pred_region
        _
      $region16: #{double_conv.1} parent=11 // pred_fallthru
        _
      // Predicated region
      $region17: #{double_conv.1} parent=11 // pred_check
        %p165 = pneg %p79
      $region18: #{double_conv.1} parent=11 // pred_check_branch
        %167 = sbr.rel (%p165) target = $region20
      $region19: #{double_conv.1} parent=11 // pred_region
        _
      $region20: #{double_conv.1} parent=11 // pred_fallthru
        _
      // Predicated region
      $region21: #{double_conv.1} parent=11 // pred_check
        %p168 = pneg %p100
      $region22: #{double_conv.1} parent=11 // pred_check_branch
        %170 = sbr.rel (%p168) target = $region24
      $region23: #{double_conv.1} parent=11 // pred_region
        _
      $region24: #{double_conv.1} parent=11 // pred_fallthru
        _
      // Predicated region
      $region25: #{double_conv.1} parent=11 // pred_check
        %p171 = pneg %p121
      $region26: #{double_conv.1} parent=11 // pred_check_branch
        %173 = sbr.rel (%p171) target = $region28
      $region27: #{double_conv.1} parent=11 // pred_region
        _
      $region28: #{double_conv.1} parent=11 // pred_fallthru
        _
    $region12: #{double_conv.1} parent=5 // pred_fallthru
      _
    %p174 = scmp.lt.s32.totalorder %s11, 2
    // Predicated region
    $region29: #{double_conv.1} parent=5 // pred_check
      %p175 = pneg %p174
    $region30: #{double_conv.1} parent=5 // pred_check_branch
      %177 = sbr.rel (%p175) target = $region32
    $region31: #{double_conv.1} parent=5 // pred_region
      // Predicated region
      $region33: #{double_conv.1} parent=31 // pred_check
        %p178 = pneg %p31
      $region34: #{double_conv.1} parent=31 // pred_check_branch
        %180 = sbr.rel (%p178) target = $region36
      $region35: #{double_conv.1} parent=31 // pred_region
        %p181 = scmp.lt.s32.totalorder %s11, 1
        %s182 = scalar_select %p181, %s11, 1
        %s183 = smul.addr %s182, 2
        %s184 = smul.addr %s183, 8
        %s185 = scalar_lea.vmem %s0, %s184
      $region36: #{double_conv.1} parent=31 // pred_fallthru
        _
    $region32: #{double_conv.1} parent=5 // pred_fallthru
      _
    %p186 = scmp.le.s32.totalorder 1, %s11
    %p187 = scmp.lt.s32.totalorder %s11, 3
    %p188 = pnand %p186, %p187
    %p189 = pneg %p188
    // Predicated region
    $region37: #{double_conv.1} parent=5 // pred_check
      _
    $region38: #{double_conv.1} parent=5 // pred_check_branch
      %191 = sbr.rel (%p188) target = $region40
    $region39: #{double_conv.1} parent=5 // pred_region
      %s192 = ssub.s32 %s11, 1
      %p193 = scmp.lt.s32.totalorder %s16, 1
      %s194 = scalar_select %p193, %s16, 1
      %s195 = smul.addr %s194, 2
      %s196 = smul.addr %s195, 8
      %s197 = scalar_lea.vmem %s0, %s196
      %p198 = pneg %p37
      %p199 = pneg %p34
      %p200 = pneg %p58
      %p201 = pneg %p55
      %p202 = pneg %p79
      %p203 = pneg %p76
      %p204 = pneg %p100
      %p205 = pneg %p97
      %p206 = pneg %p121
      %p207 = pneg %p118
      %p208 = pneg %p147
      %p209 = pneg %p144
      %p210 = scmp.lt.s32.totalorder %s16, 1
      %s211 = scalar_select %p210, %s16, 1
      %s212 = smul.addr %s211, 8
      %s213 = smul.addr %s212, 8
      %s214 = scalar_lea.vmem %s5, %s213
      %p215 = scmp.lt.s32.totalorder %s16, 1
      %s216 = scalar_select %p215, %s16, 1
      %s217 = smul.addr %s216, 2
      %s218 = smul.addr %s217, 8
      %s219 = scalar_lea.vmem %s0, %s218
      %p220 = scmp.lt.s32.totalorder %s16, 1
      %s221 = scalar_select %p220, %s16, 1
      %s222 = smul.addr %s221, 8
      %s223 = smul.addr %s222, 8
      %s224 = scalar_lea.vmem %s5, %s223
      %v226 = vlaneseq
      %v227 = vand.u32 %v226, 127
      %v228 = vadd.s32 %v227, 128
      %vm229 = vcmp.lt.s32.totalorder %v227, 0
      %v230 = vsub.s32 0, %v227
      %v231 = vsel %vm229, %v230, %v227
      %v232 = vshrl.u32 %v231, 4
      %v233 = vand.u32 %v231, 15
      %v234 = vsub.s32 0, %v233
      %v235 = vsel %vm229, %v234, %v233
      %vm236 = vcmp.lt.s32.totalorder %v228, 0
      %v237 = vsub.s32 0, %v228
      %v238 = vsel %vm236, %v237, %v228
      %v239 = vshrl.u32 %v238, 4
      %v240 = vand.u32 %v238, 15
      %v241 = vsub.s32 0, %v240
      %v242 = vsel %vm236, %v241, %v240
      %vm243 = vcmp.ne.s32.totalorder %v235, 0
      %vm244 = vcmp.ne.s32.totalorder %v242, 0
      %vm245 = vcmp.lt.s32.totalorder %v235, 0
      %vm246 = vcmp.lt.s32.totalorder %v242, 0
      %vm247 = vmand %vm245, %vm243
      %vm248 = vmand %vm246, %vm244
      %v249 = vadd.s32 %v235, 16
      %v250 = vadd.s32 %v242, 16
      %v251 = vsel %vm247, %v249, %v235
      %v252 = vsel %vm248, %v250, %v242
      %vm253 = vcmp.ge.s32.totalorder %v227, 16
      %vm254 = vcmp.ge.s32.totalorder %v228, 16
      %vm255 = vcmp.lt.s32.totalorder %v227, 240
      %vm256 = vcmp.lt.s32.totalorder %v228, 240
      %vm257 = vcmp.ge.s32.totalorder %v251, 1
      %vm258 = vcmp.ge.s32.totalorder %v252, 1
      %vm259 = vcmp.le.s32.totalorder %v251, 14
      %vm260 = vcmp.le.s32.totalorder %v252, 14
      %vm261 = vmand %vm253, %vm257
      %vm262 = vmand %vm254, %vm258
      %vm263 = vmand %vm253, %vm259
      %vm264 = vmand %vm254, %vm260
      %vm265 = vmand %vm255, %vm257
      %vm266 = vmand %vm256, %vm258
      %vm267 = vmand %vm255, %vm259
      %vm268 = vmand %vm256, %vm260
      %v269 = vld [vmem:[%s219] sm:$0xff]
      %v270 = vld [vmem:[%s219 + $0x8] sm:$0xff]
      %271 = vrot.lane.b32.xlu0 %v269, 17
      %v272 = vpop.permute.xlu0 %271
      %273 = vrot.lane.b32.xlu0 %v270, 17
      %v274 = vpop.permute.xlu0 %273
      %vm275 = vcmp.lt.s32.totalorder %v227, 17
      %v276 = vsel %vm275, %v272, %v274
      %v277 = vsel %vm275, %v274, %v272
      %v278 = vsel %vm261, 1, 0
      %v279 = vsel %vm262, 1, 0
      %vm280 = vcmp.eq.s32.totalorder %v278, 1
      %vm281 = vcmp.eq.s32.totalorder %v279, 1
      %v282 = vsel %vm280, %v277, 0.0
      %v283 = vsel %vm281, %v276, 0.0
      %v284 = vld [vmem:[%s1] sm:$0xf]
      %v285 = vld [vmem:[%s1 + $0x4] sm:$0xf]
      %v286 = vld [vmem:[%s1 + $0x8] sm:$0xf]
      %v287 = vld [vmem:[%s1 + $0xc] sm:$0xf]
      %v288 = vpack.c.bf16 %v282, %v282
      %v289 = vpack.c.bf16 %v283, %v283
      %290 = vrot.lane.b32.xlu0 %v269, 16
      %v291 = vpop.permute.xlu0 %290
      %292 = vrot.lane.b32.xlu0 %v270, 16
      %v293 = vpop.permute.xlu0 %292
      %vm294 = vcmp.lt.s32.totalorder %v227, 16
      %v295 = vsel %vm294, %v291, %v293
      %v296 = vsel %vm294, %v293, %v291
      %v297 = vsel %vm253, 1, 0
      %v298 = vsel %vm254, 1, 0
      %vm299 = vcmp.eq.s32.totalorder %v297, 1
      %vm300 = vcmp.eq.s32.totalorder %v298, 1
      %v301 = vsel %vm299, %v296, 0.0
      %v302 = vsel %vm300, %v295, 0.0
      %s303 = scalar_lea.vmem %s1, 16
      %v304 = vld [vmem:[%s303] sm:$0xf]
      %v305 = vld [vmem:[%s303 + $0x4] sm:$0xf]
      %v306 = vld [vmem:[%s303 + $0x8] sm:$0xf]
      %v307 = vld [vmem:[%s303 + $0xc] sm:$0xf]
      %v308 = vpack.c.bf16 %v301, %v301
      %v309 = vpack.c.bf16 %v302, %v302
      %v314 = vunpack.c.l.b16 %v304
      %v315 = vunpack.c.l.b16 %v305
      %v316 = vunpack.c.l.b16 %v306
      %v317 = vunpack.c.l.b16 %v307
      %v318 = vpack.c.b16 %v315, %v314
      %v319 = vpack.c.b16 %v317, %v316
      %vm320 = vcmask 64512
      %v322 = vsel %vm320, %v318, 0
      %v325 = vsel %vm320, %v319, 0
      %vm327 = vcmask 1043456
      %v329 = vsel %vm327, %v308, 0
      %v332 = vsel %vm327, %v309, 0
      %334 = vmatprep.subr.bf16.mxu0 0
      %335 = vmatpush1.bf16.msra.mxu0 0
      %336 = vmatprep.subr.bf16.mxu0 0
      %337 = vmatpush1.bf16.msra.mxu0 0
      %338 = vmatprep.subr.bf16.mxu0 0
      %339 = vmatpush1.bf16.msra.mxu0 0
      %340 = vmatprep.subr.bf16.mxu0 0
      %341 = vmatpush1.bf16.msra.mxu0 0
      %342 = vmatprep.subr.bf16.mxu0 0
      %343 = vmatpush1.bf16.msra.mxu0 0
      %344 = vmatprep.subr.bf16.mxu0 0
      %345 = vmatpush1.bf16.msra.mxu0 0
      %346 = vmatprep.subr.bf16.mxu0 0
      %347 = vmatpush1.bf16.msra.mxu0 0
      %348 = vmatprep.subr.bf16.mxu0 %v332
      %349 = vmatpush1.bf16.msra.mxu0 %v329
      %350 = vmatprep.subr.bf16.mxu0 0
      %351 = vmatpush2.bf16.msra.mxu0 0
      %352 = vmatprep.subr.bf16.mxu0 0
      %353 = vmatpush2.bf16.msra.mxu0 0
      %354 = vmatprep.subr.bf16.mxu0 0
      %355 = vmatpush2.bf16.msra.mxu0 0
      %356 = vmatprep.subr.bf16.mxu0 0
      %357 = vmatpush2.bf16.msra.mxu0 0
      %358 = vmatprep.subr.bf16.mxu0 0
      %359 = vmatpush2.bf16.msra.mxu0 0
      %360 = vmatprep.subr.bf16.mxu0 0
      %361 = vmatpush2.bf16.msra.mxu0 0
      %362 = vmatprep.subr.bf16.mxu0 0
      %363 = vmatpush2.bf16.msra.mxu0 0
      %364 = vmatprep.subr.bf16.mxu0 0
      %365 = vmatpush2.bf16.msra.mxu0 0
      %366 = vmatprep.mubr.bf16.mxu0 0
      %367 = vmatmul.mubr.bf16.gmra.mxu0 %v322
      %v368 = vpop.f32.mrf.mxu0
      %v369 = vadd.f32 0.0, %v368
      %v370 = vpop.f32.mrf.mxu0
      %v371 = vadd.f32 0.0, %v370
      %v372 = vpop.f32.mrf.mxu0
      %v373 = vadd.f32 0.0, %v372
      %v374 = vpop.f32.mrf.mxu0
      %v375 = vadd.f32 0.0, %v374
      %376 = vmatprep.mubr.bf16.mxu0 0
      %377 = vmatmul.mubr.bf16.gmra.mxu0 %v325
      %v378 = vpop.f32.mrf.mxu0
      %v379 = vadd.f32 0.0, %v378
      %v380 = vpop.f32.mrf.mxu0
      %v381 = vadd.f32 0.0, %v380
      %v382 = vpop.f32.mrf.mxu0
      %v383 = vadd.f32 0.0, %v382
      %v384 = vpop.f32.mrf.mxu0
      %v385 = vadd.f32 0.0, %v384
      %386 = vdwg.mxu0
      %v391 = vunpack.c.l.b16 %v284
      %v392 = vunpack.c.l.b16 %v285
      %v393 = vunpack.c.l.b16 %v286
      %v394 = vunpack.c.l.b16 %v287
      %v395 = vpack.c.b16 %v392, %v391
      %v396 = vpack.c.b16 %v394, %v393
      %v398 = vsel %vm320, %v395, 0
      %v401 = vsel %vm320, %v396, 0
      %v404 = vsel %vm327, %v288, 0
      %v407 = vsel %vm327, %v289, 0
      %409 = vmatprep.subr.bf16.mxu0 0
      %410 = vmatpush1.bf16.msra.mxu0 0
      %411 = vmatprep.subr.bf16.mxu0 0
      %412 = vmatpush1.bf16.msra.mxu0 0
      %413 = vmatprep.subr.bf16.mxu0 0
      %414 = vmatpush1.bf16.msra.mxu0 0
      %415 = vmatprep.subr.bf16.mxu0 0
      %416 = vmatpush1.bf16.msra.mxu0 0
      %417 = vmatprep.subr.bf16.mxu0 0
      %418 = vmatpush1.bf16.msra.mxu0 0
      %419 = vmatprep.subr.bf16.mxu0 0
      %420 = vmatpush1.bf16.msra.mxu0 0
      %421 = vmatprep.subr.bf16.mxu0 0
      %422 = vmatpush1.bf16.msra.mxu0 0
      %423 = vmatprep.subr.bf16.mxu0 %v407
      %424 = vmatpush1.bf16.msra.mxu0 %v404
      %425 = vmatprep.subr.bf16.mxu0 0
      %426 = vmatpush2.bf16.msra.mxu0 0
      %427 = vmatprep.subr.bf16.mxu0 0
      %428 = vmatpush2.bf16.msra.mxu0 0
      %429 = vmatprep.subr.bf16.mxu0 0
      %430 = vmatpush2.bf16.msra.mxu0 0
      %431 = vmatprep.subr.bf16.mxu0 0
      %432 = vmatpush2.bf16.msra.mxu0 0
      %433 = vmatprep.subr.bf16.mxu0 0
      %434 = vmatpush2.bf16.msra.mxu0 0
      %435 = vmatprep.subr.bf16.mxu0 0
      %436 = vmatpush2.bf16.msra.mxu0 0
      %437 = vmatprep.subr.bf16.mxu0 0
      %438 = vmatpush2.bf16.msra.mxu0 0
      %439 = vmatprep.subr.bf16.mxu0 0
      %440 = vmatpush2.bf16.msra.mxu0 0
      %441 = vmatprep.mubr.bf16.mxu0 0
      %442 = vmatmul.mubr.bf16.gmra.mxu0 %v398
      %v443 = vpop.f32.mrf.mxu0
      %v444 = vadd.f32 %v369, %v443
      %v445 = vpop.f32.mrf.mxu0
      %v446 = vadd.f32 %v371, %v445
      %v447 = vpop.f32.mrf.mxu0
      %v448 = vadd.f32 %v373, %v447
      %v449 = vpop.f32.mrf.mxu0
      %v450 = vadd.f32 %v375, %v449
      %451 = vmatprep.mubr.bf16.mxu0 0
      %452 = vmatmul.mubr.bf16.gmra.mxu0 %v401
      %v453 = vpop.f32.mrf.mxu0
      %v454 = vadd.f32 %v379, %v453
      %v455 = vpop.f32.mrf.mxu0
      %v456 = vadd.f32 %v381, %v455
      %v457 = vpop.f32.mrf.mxu0
      %v458 = vadd.f32 %v383, %v457
      %v459 = vpop.f32.mrf.mxu0
      %v460 = vadd.f32 %v385, %v459
      %461 = vdwg.mxu0
      %462 = vrot.lane.b32.xlu0 %v269, 15
      %v463 = vpop.permute.xlu0 %462
      %464 = vrot.lane.b32.xlu0 %v270, 15
      %v465 = vpop.permute.xlu0 %464
      %vm466 = vcmp.lt.s32.totalorder %v227, 15
      %v467 = vsel %vm466, %v463, %v465
      %v468 = vsel %vm466, %v465, %v463
      %v469 = vsel %vm263, 1, 0
      %v470 = vsel %vm264, 1, 0
      %vm471 = vcmp.eq.s32.totalorder %v469, 1
      %vm472 = vcmp.eq.s32.totalorder %v470, 1
      %v473 = vsel %vm471, %v468, 0.0
      %v474 = vsel %vm472, %v467, 0.0
      %s475 = scalar_lea.vmem %s1, 32
      %v476 = vld [vmem:[%s475] sm:$0xf]
      %v477 = vld [vmem:[%s475 + $0x4] sm:$0xf]
      %v478 = vld [vmem:[%s475 + $0x8] sm:$0xf]
      %v479 = vld [vmem:[%s475 + $0xc] sm:$0xf]
      %v480 = vpack.c.bf16 %v473, %v473
      %v481 = vpack.c.bf16 %v474, %v474
      %v486 = vunpack.c.l.b16 %v476
      %v487 = vunpack.c.l.b16 %v477
      %v488 = vunpack.c.l.b16 %v478
      %v489 = vunpack.c.l.b16 %v479
      %v490 = vpack.c.b16 %v487, %v486
      %v491 = vpack.c.b16 %v489, %v488
      %v493 = vsel %vm320, %v490, 0
      %v496 = vsel %vm320, %v491, 0
      %v499 = vsel %vm327, %v480, 0
      %v502 = vsel %vm327, %v481, 0
      %504 = vmatprep.subr.bf16.mxu0 0
      %505 = vmatpush1.bf16.msra.mxu0 0
      %506 = vmatprep.subr.bf16.mxu0 0
      %507 = vmatpush1.bf16.msra.mxu0 0
      %508 = vmatprep.subr.bf16.mxu0 0
      %509 = vmatpush1.bf16.msra.mxu0 0
      %510 = vmatprep.subr.bf16.mxu0 0
      %511 = vmatpush1.bf16.msra.mxu0 0
      %512 = vmatprep.subr.bf16.mxu0 0
      %513 = vmatpush1.bf16.msra.mxu0 0
      %514 = vmatprep.subr.bf16.mxu0 0
      %515 = vmatpush1.bf16.msra.mxu0 0
      %516 = vmatprep.subr.bf16.mxu0 0
      %517 = vmatpush1.bf16.msra.mxu0 0
      %518 = vmatprep.subr.bf16.mxu0 %v502
      %519 = vmatpush1.bf16.msra.mxu0 %v499
      %520 = vmatprep.subr.bf16.mxu0 0
      %521 = vmatpush2.bf16.msra.mxu0 0
      %522 = vmatprep.subr.bf16.mxu0 0
      %523 = vmatpush2.bf16.msra.mxu0 0
      %524 = vmatprep.subr.bf16.mxu0 0
      %525 = vmatpush2.bf16.msra.mxu0 0
      %526 = vmatprep.subr.bf16.mxu0 0
      %527 = vmatpush2.bf16.msra.mxu0 0
      %528 = vmatprep.subr.bf16.mxu0 0
      %529 = vmatpush2.bf16.msra.mxu0 0
      %530 = vmatprep.subr.bf16.mxu0 0
      %531 = vmatpush2.bf16.msra.mxu0 0
      %532 = vmatprep.subr.bf16.mxu0 0
      %533 = vmatpush2.bf16.msra.mxu0 0
      %534 = vmatprep.subr.bf16.mxu0 0
      %535 = vmatpush2.bf16.msra.mxu0 0
      %536 = vmatprep.mubr.bf16.mxu0 0
      %537 = vmatmul.mubr.bf16.gmra.mxu0 %v493
      %v538 = vpop.f32.mrf.mxu0
      %v539 = vadd.f32 0.0, %v538
      %v540 = vpop.f32.mrf.mxu0
      %v541 = vadd.f32 0.0, %v540
      %v542 = vpop.f32.mrf.mxu0
      %v543 = vadd.f32 0.0, %v542
      %v544 = vpop.f32.mrf.mxu0
      %v545 = vadd.f32 0.0, %v544
      %546 = vmatprep.mubr.bf16.mxu0 0
      %547 = vmatmul.mubr.bf16.gmra.mxu0 %v496
      %v548 = vpop.f32.mrf.mxu0
      %v549 = vadd.f32 0.0, %v548
      %v550 = vpop.f32.mrf.mxu0
      %v551 = vadd.f32 0.0, %v550
      %v552 = vpop.f32.mrf.mxu0
      %v553 = vadd.f32 0.0, %v552
      %v554 = vpop.f32.mrf.mxu0
      %v555 = vadd.f32 0.0, %v554
      %556 = vdwg.mxu0
      %v557 = vadd.f32 %v444, %v539
      %v558 = vadd.f32 %v446, %v541
      %v559 = vadd.f32 %v448, %v543
      %v560 = vadd.f32 %v450, %v545
      %v561 = vadd.f32 %v454, %v549
      %v562 = vadd.f32 %v456, %v551
      %v563 = vadd.f32 %v458, %v553
      %v564 = vadd.f32 %v460, %v555
      %565 = vrot.lane.b32.xlu0 %v269, 1
      %v566 = vpop.permute.xlu0 %565
      %567 = vrot.lane.b32.xlu0 %v270, 1
      %v568 = vpop.permute.xlu0 %567
      %vm569 = vcmp.lt.s32.totalorder %v227, 1
      %v570 = vsel %vm569, %v566, %v568
      %v571 = vsel %vm569, %v568, %v566
      %v572 = vsel %vm257, 1, 0
      %v573 = vsel %vm258, 1, 0
      %vm574 = vcmp.eq.s32.totalorder %v572, 1
      %vm575 = vcmp.eq.s32.totalorder %v573, 1
      %v576 = vsel %vm574, %v571, 0.0
      %v577 = vsel %vm575, %v570, 0.0
      %s578 = scalar_lea.vmem %s1, 48
      %v579 = vld [vmem:[%s578] sm:$0xf]
      %v580 = vld [vmem:[%s578 + $0x4] sm:$0xf]
      %v581 = vld [vmem:[%s578 + $0x8] sm:$0xf]
      %v582 = vld [vmem:[%s578 + $0xc] sm:$0xf]
      %v583 = vpack.c.bf16 %v576, %v576
      %v584 = vpack.c.bf16 %v577, %v577
      %v589 = vunpack.c.l.b16 %v579
      %v590 = vunpack.c.l.b16 %v580
      %v591 = vunpack.c.l.b16 %v581
      %v592 = vunpack.c.l.b16 %v582
      %v593 = vpack.c.b16 %v590, %v589
      %v594 = vpack.c.b16 %v592, %v591
      %v596 = vsel %vm320, %v593, 0
      %v599 = vsel %vm320, %v594, 0
      %v602 = vsel %vm327, %v583, 0
      %v605 = vsel %vm327, %v584, 0
      %607 = vmatprep.subr.bf16.mxu0 0
      %608 = vmatpush1.bf16.msra.mxu0 0
      %609 = vmatprep.subr.bf16.mxu0 0
      %610 = vmatpush1.bf16.msra.mxu0 0
      %611 = vmatprep.subr.bf16.mxu0 0
      %612 = vmatpush1.bf16.msra.mxu0 0
      %613 = vmatprep.subr.bf16.mxu0 0
      %614 = vmatpush1.bf16.msra.mxu0 0
      %615 = vmatprep.subr.bf16.mxu0 0
      %616 = vmatpush1.bf16.msra.mxu0 0
      %617 = vmatprep.subr.bf16.mxu0 0
      %618 = vmatpush1.bf16.msra.mxu0 0
      %619 = vmatprep.subr.bf16.mxu0 0
      %620 = vmatpush1.bf16.msra.mxu0 0
      %621 = vmatprep.subr.bf16.mxu0 %v605
      %622 = vmatpush1.bf16.msra.mxu0 %v602
      %623 = vmatprep.subr.bf16.mxu0 0
      %624 = vmatpush2.bf16.msra.mxu0 0
      %625 = vmatprep.subr.bf16.mxu0 0
      %626 = vmatpush2.bf16.msra.mxu0 0
      %627 = vmatprep.subr.bf16.mxu0 0
      %628 = vmatpush2.bf16.msra.mxu0 0
      %629 = vmatprep.subr.bf16.mxu0 0
      %630 = vmatpush2.bf16.msra.mxu0 0
      %631 = vmatprep.subr.bf16.mxu0 0
      %632 = vmatpush2.bf16.msra.mxu0 0
      %633 = vmatprep.subr.bf16.mxu0 0
      %634 = vmatpush2.bf16.msra.mxu0 0
      %635 = vmatprep.subr.bf16.mxu0 0
      %636 = vmatpush2.bf16.msra.mxu0 0
      %637 = vmatprep.subr.bf16.mxu0 0
      %638 = vmatpush2.bf16.msra.mxu0 0
      %639 = vmatprep.mubr.bf16.mxu0 0
      %640 = vmatmul.mubr.bf16.gmra.mxu0 %v596
      %v641 = vpop.f32.mrf.mxu0
      %v642 = vadd.f32 0.0, %v641
      %v643 = vpop.f32.mrf.mxu0
      %v644 = vadd.f32 0.0, %v643
      %v645 = vpop.f32.mrf.mxu0
      %v646 = vadd.f32 0.0, %v645
      %v647 = vpop.f32.mrf.mxu0
      %v648 = vadd.f32 0.0, %v647
      %649 = vmatprep.mubr.bf16.mxu0 0
      %650 = vmatmul.mubr.bf16.gmra.mxu0 %v599
      %v651 = vpop.f32.mrf.mxu0
      %v652 = vadd.f32 0.0, %v651
      %v653 = vpop.f32.mrf.mxu0
      %v654 = vadd.f32 0.0, %v653
      %v655 = vpop.f32.mrf.mxu0
      %v656 = vadd.f32 0.0, %v655
      %v657 = vpop.f32.mrf.mxu0
      %v658 = vadd.f32 0.0, %v657
      %659 = vdwg.mxu0
      %v660 = vadd.f32 %v557, %v642
      %v661 = vadd.f32 %v558, %v644
      %v662 = vadd.f32 %v559, %v646
      %v663 = vadd.f32 %v560, %v648
      %v664 = vadd.f32 %v561, %v652
      %v665 = vadd.f32 %v562, %v654
      %v666 = vadd.f32 %v563, %v656
      %v667 = vadd.f32 %v564, %v658
      %s668 = scalar_lea.vmem %s1, 64
      %v669 = vld [vmem:[%s668] sm:$0xf]
      %v670 = vld [vmem:[%s668 + $0x4] sm:$0xf]
      %v671 = vld [vmem:[%s668 + $0x8] sm:$0xf]
      %v672 = vld [vmem:[%s668 + $0xc] sm:$0xf]
      %v673 = vpack.c.bf16 %v269, %v269
      %v674 = vpack.c.bf16 %v270, %v270
      %v679 = vunpack.c.l.b16 %v669
      %v680 = vunpack.c.l.b16 %v670
      %v681 = vunpack.c.l.b16 %v671
      %v682 = vunpack.c.l.b16 %v672
      %v683 = vpack.c.b16 %v680, %v679
      %v684 = vpack.c.b16 %v682, %v681
      %v686 = vsel %vm320, %v683, 0
      %v689 = vsel %vm320, %v684, 0
      %v692 = vsel %vm327, %v673, 0
      %v695 = vsel %vm327, %v674, 0
      %697 = vmatprep.subr.bf16.mxu0 0
      %698 = vmatpush1.bf16.msra.mxu0 0
      %699 = vmatprep.subr.bf16.mxu0 0
      %700 = vmatpush1.bf16.msra.mxu0 0
      %701 = vmatprep.subr.bf16.mxu0 0
      %702 = vmatpush1.bf16.msra.mxu0 0
      %703 = vmatprep.subr.bf16.mxu0 0
      %704 = vmatpush1.bf16.msra.mxu0 0
      %705 = vmatprep.subr.bf16.mxu0 0
      %706 = vmatpush1.bf16.msra.mxu0 0
      %707 = vmatprep.subr.bf16.mxu0 0
      %708 = vmatpush1.bf16.msra.mxu0 0
      %709 = vmatprep.subr.bf16.mxu0 0
      %710 = vmatpush1.bf16.msra.mxu0 0
      %711 = vmatprep.subr.bf16.mxu0 %v695
      %712 = vmatpush1.bf16.msra.mxu0 %v692
      %713 = vmatprep.subr.bf16.mxu0 0
      %714 = vmatpush2.bf16.msra.mxu0 0
      %715 = vmatprep.subr.bf16.mxu0 0
      %716 = vmatpush2.bf16.msra.mxu0 0
      %717 = vmatprep.subr.bf16.mxu0 0
      %718 = vmatpush2.bf16.msra.mxu0 0
      %719 = vmatprep.subr.bf16.mxu0 0
      %720 = vmatpush2.bf16.msra.mxu0 0
      %721 = vmatprep.subr.bf16.mxu0 0
      %722 = vmatpush2.bf16.msra.mxu0 0
      %723 = vmatprep.subr.bf16.mxu0 0
      %724 = vmatpush2.bf16.msra.mxu0 0
      %725 = vmatprep.subr.bf16.mxu0 0
      %726 = vmatpush2.bf16.msra.mxu0 0
      %727 = vmatprep.subr.bf16.mxu0 0
      %728 = vmatpush2.bf16.msra.mxu0 0
      %729 = vmatprep.mubr.bf16.mxu0 0
      %730 = vmatmul.mubr.bf16.gmra.mxu0 %v686
      %v731 = vpop.f32.mrf.mxu0
      %v732 = vadd.f32 0.0, %v731
      %v733 = vpop.f32.mrf.mxu0
      %v734 = vadd.f32 0.0, %v733
      %v735 = vpop.f32.mrf.mxu0
      %v736 = vadd.f32 0.0, %v735
      %v737 = vpop.f32.mrf.mxu0
      %v738 = vadd.f32 0.0, %v737
      %739 = vmatprep.mubr.bf16.mxu0 0
      %740 = vmatmul.mubr.bf16.gmra.mxu0 %v689
      %v741 = vpop.f32.mrf.mxu0
      %v742 = vadd.f32 0.0, %v741
      %v743 = vpop.f32.mrf.mxu0
      %v744 = vadd.f32 0.0, %v743
      %v745 = vpop.f32.mrf.mxu0
      %v746 = vadd.f32 0.0, %v745
      %v747 = vpop.f32.mrf.mxu0
      %v748 = vadd.f32 0.0, %v747
      %749 = vdwg.mxu0
      %v750 = vadd.f32 %v660, %v732
      %v751 = vadd.f32 %v661, %v734
      %v752 = vadd.f32 %v662, %v736
      %v753 = vadd.f32 %v663, %v738
      %v754 = vadd.f32 %v664, %v742
      %v755 = vadd.f32 %v665, %v744
      %v756 = vadd.f32 %v666, %v746
      %v757 = vadd.f32 %v667, %v748
      %758 = vrot.lane.b32.xlu0 %v269, 127
      %v759 = vpop.permute.xlu0 %758
      %760 = vrot.lane.b32.xlu0 %v270, 127
      %v761 = vpop.permute.xlu0 %760
      %vm762 = vcmp.lt.s32.totalorder %v227, 127
      %v763 = vsel %vm762, %v759, %v761
      %v764 = vsel %vm762, %v761, %v759
      %v765 = vsel %vm259, 1, 0
      %v766 = vsel %vm260, 1, 0
      %vm767 = vcmp.eq.s32.totalorder %v765, 1
      %vm768 = vcmp.eq.s32.totalorder %v766, 1
      %v769 = vsel %vm767, %v763, 0.0
      %v770 = vsel %vm768, %v764, 0.0
      %s771 = scalar_lea.vmem %s1, 80
      %v772 = vld [vmem:[%s771] sm:$0xf]
      %v773 = vld [vmem:[%s771 + $0x4] sm:$0xf]
      %v774 = vld [vmem:[%s771 + $0x8] sm:$0xf]
      %v775 = vld [vmem:[%s771 + $0xc] sm:$0xf]
      %v776 = vpack.c.bf16 %v769, %v769
      %v777 = vpack.c.bf16 %v770, %v770
      %v782 = vunpack.c.l.b16 %v772
      %v783 = vunpack.c.l.b16 %v773
      %v784 = vunpack.c.l.b16 %v774
      %v785 = vunpack.c.l.b16 %v775
      %v786 = vpack.c.b16 %v783, %v782
      %v787 = vpack.c.b16 %v785, %v784
      %v789 = vsel %vm320, %v786, 0
      %v792 = vsel %vm320, %v787, 0
      %v795 = vsel %vm327, %v776, 0
      %v798 = vsel %vm327, %v777, 0
      %800 = vmatprep.subr.bf16.mxu0 0
      %801 = vmatpush1.bf16.msra.mxu0 0
      %802 = vmatprep.subr.bf16.mxu0 0
      %803 = vmatpush1.bf16.msra.mxu0 0
      %804 = vmatprep.subr.bf16.mxu0 0
      %805 = vmatpush1.bf16.msra.mxu0 0
      %806 = vmatprep.subr.bf16.mxu0 0
      %807 = vmatpush1.bf16.msra.mxu0 0
      %808 = vmatprep.subr.bf16.mxu0 0
      %809 = vmatpush1.bf16.msra.mxu0 0
      %810 = vmatprep.subr.bf16.mxu0 0
      %811 = vmatpush1.bf16.msra.mxu0 0
      %812 = vmatprep.subr.bf16.mxu0 0
      %813 = vmatpush1.bf16.msra.mxu0 0
      %814 = vmatprep.subr.bf16.mxu0 %v798
      %815 = vmatpush1.bf16.msra.mxu0 %v795
      %816 = vmatprep.subr.bf16.mxu0 0
      %817 = vmatpush2.bf16.msra.mxu0 0
      %818 = vmatprep.subr.bf16.mxu0 0
      %819 = vmatpush2.bf16.msra.mxu0 0
      %820 = vmatprep.subr.bf16.mxu0 0
      %821 = vmatpush2.bf16.msra.mxu0 0
      %822 = vmatprep.subr.bf16.mxu0 0
      %823 = vmatpush2.bf16.msra.mxu0 0
      %824 = vmatprep.subr.bf16.mxu0 0
      %825 = vmatpush2.bf16.msra.mxu0 0
      %826 = vmatprep.subr.bf16.mxu0 0
      %827 = vmatpush2.bf16.msra.mxu0 0
      %828 = vmatprep.subr.bf16.mxu0 0
      %829 = vmatpush2.bf16.msra.mxu0 0
      %830 = vmatprep.subr.bf16.mxu0 0
      %831 = vmatpush2.bf16.msra.mxu0 0
      %832 = vmatprep.mubr.bf16.mxu0 0
      %833 = vmatmul.mubr.bf16.gmra.mxu0 %v789
      %v834 = vpop.f32.mrf.mxu0
      %v835 = vadd.f32 0.0, %v834
      %v836 = vpop.f32.mrf.mxu0
      %v837 = vadd.f32 0.0, %v836
      %v838 = vpop.f32.mrf.mxu0
      %v839 = vadd.f32 0.0, %v838
      %v840 = vpop.f32.mrf.mxu0
      %v841 = vadd.f32 0.0, %v840
      %842 = vmatprep.mubr.bf16.mxu0 0
      %843 = vmatmul.mubr.bf16.gmra.mxu0 %v792
      %v844 = vpop.f32.mrf.mxu0
      %v845 = vadd.f32 0.0, %v844
      %v846 = vpop.f32.mrf.mxu0
      %v847 = vadd.f32 0.0, %v846
      %v848 = vpop.f32.mrf.mxu0
      %v849 = vadd.f32 0.0, %v848
      %v850 = vpop.f32.mrf.mxu0
      %v851 = vadd.f32 0.0, %v850
      %852 = vdwg.mxu0
      %v853 = vadd.f32 %v750, %v835
      %v854 = vadd.f32 %v751, %v837
      %v855 = vadd.f32 %v752, %v839
      %v856 = vadd.f32 %v753, %v841
      %v857 = vadd.f32 %v754, %v845
      %v858 = vadd.f32 %v755, %v847
      %v859 = vadd.f32 %v756, %v849
      %v860 = vadd.f32 %v757, %v851
      %861 = vrot.lane.b32.xlu0 %v269, 113
      %v862 = vpop.permute.xlu0 %861
      %863 = vrot.lane.b32.xlu0 %v270, 113
      %v864 = vpop.permute.xlu0 %863
      %vm865 = vcmp.lt.s32.totalorder %v227, 113
      %v866 = vsel %vm865, %v862, %v864
      %v867 = vsel %vm865, %v864, %v862
      %v868 = vsel %vm265, 1, 0
      %v869 = vsel %vm266, 1, 0
      %vm870 = vcmp.eq.s32.totalorder %v868, 1
      %vm871 = vcmp.eq.s32.totalorder %v869, 1
      %v872 = vsel %vm870, %v866, 0.0
      %v873 = vsel %vm871, %v867, 0.0
      %s874 = scalar_lea.vmem %s1, 96
      %v875 = vld [vmem:[%s874] sm:$0xf]
      %v876 = vld [vmem:[%s874 + $0x4] sm:$0xf]
      %v877 = vld [vmem:[%s874 + $0x8] sm:$0xf]
      %v878 = vld [vmem:[%s874 + $0xc] sm:$0xf]
      %v879 = vpack.c.bf16 %v872, %v872
      %v880 = vpack.c.bf16 %v873, %v873
      %v885 = vunpack.c.l.b16 %v875
      %v886 = vunpack.c.l.b16 %v876
      %v887 = vunpack.c.l.b16 %v877
      %v888 = vunpack.c.l.b16 %v878
      %v889 = vpack.c.b16 %v886, %v885
      %v890 = vpack.c.b16 %v888, %v887
      %v892 = vsel %vm320, %v889, 0
      %v895 = vsel %vm320, %v890, 0
      %v898 = vsel %vm327, %v879, 0
      %v901 = vsel %vm327, %v880, 0
      %903 = vmatprep.subr.bf16.mxu0 0
      %904 = vmatpush1.bf16.msra.mxu0 0
      %905 = vmatprep.subr.bf16.mxu0 0
      %906 = vmatpush1.bf16.msra.mxu0 0
      %907 = vmatprep.subr.bf16.mxu0 0
      %908 = vmatpush1.bf16.msra.mxu0 0
      %909 = vmatprep.subr.bf16.mxu0 0
      %910 = vmatpush1.bf16.msra.mxu0 0
      %911 = vmatprep.subr.bf16.mxu0 0
      %912 = vmatpush1.bf16.msra.mxu0 0
      %913 = vmatprep.subr.bf16.mxu0 0
      %914 = vmatpush1.bf16.msra.mxu0 0
      %915 = vmatprep.subr.bf16.mxu0 0
      %916 = vmatpush1.bf16.msra.mxu0 0
      %917 = vmatprep.subr.bf16.mxu0 %v901
      %918 = vmatpush1.bf16.msra.mxu0 %v898
      %919 = vmatprep.subr.bf16.mxu0 0
      %920 = vmatpush2.bf16.msra.mxu0 0
      %921 = vmatprep.subr.bf16.mxu0 0
      %922 = vmatpush2.bf16.msra.mxu0 0
      %923 = vmatprep.subr.bf16.mxu0 0
      %924 = vmatpush2.bf16.msra.mxu0 0
      %925 = vmatprep.subr.bf16.mxu0 0
      %926 = vmatpush2.bf16.msra.mxu0 0
      %927 = vmatprep.subr.bf16.mxu0 0
      %928 = vmatpush2.bf16.msra.mxu0 0
      %929 = vmatprep.subr.bf16.mxu0 0
      %930 = vmatpush2.bf16.msra.mxu0 0
      %931 = vmatprep.subr.bf16.mxu0 0
      %932 = vmatpush2.bf16.msra.mxu0 0
      %933 = vmatprep.subr.bf16.mxu0 0
      %934 = vmatpush2.bf16.msra.mxu0 0
      %935 = vmatprep.mubr.bf16.mxu0 0
      %936 = vmatmul.mubr.bf16.gmra.mxu0 %v892
      %v937 = vpop.f32.mrf.mxu0
      %v938 = vadd.f32 0.0, %v937
      %v939 = vpop.f32.mrf.mxu0
      %v940 = vadd.f32 0.0, %v939
      %v941 = vpop.f32.mrf.mxu0
      %v942 = vadd.f32 0.0, %v941
      %v943 = vpop.f32.mrf.mxu0
      %v944 = vadd.f32 0.0, %v943
      %945 = vmatprep.mubr.bf16.mxu0 0
      %946 = vmatmul.mubr.bf16.gmra.mxu0 %v895
      %v947 = vpop.f32.mrf.mxu0
      %v948 = vadd.f32 0.0, %v947
      %v949 = vpop.f32.mrf.mxu0
      %v950 = vadd.f32 0.0, %v949
      %v951 = vpop.f32.mrf.mxu0
      %v952 = vadd.f32 0.0, %v951
      %v953 = vpop.f32.mrf.mxu0
      %v954 = vadd.f32 0.0, %v953
      %955 = vdwg.mxu0
      %v956 = vadd.f32 %v853, %v938
      %v957 = vadd.f32 %v854, %v940
      %v958 = vadd.f32 %v855, %v942
      %v959 = vadd.f32 %v856, %v944
      %v960 = vadd.f32 %v857, %v948
      %v961 = vadd.f32 %v858, %v950
      %v962 = vadd.f32 %v859, %v952
      %v963 = vadd.f32 %v860, %v954
      %964 = vrot.lane.b32.xlu0 %v269, 112
      %v965 = vpop.permute.xlu0 %964
      %966 = vrot.lane.b32.xlu0 %v270, 112
      %v967 = vpop.permute.xlu0 %966
      %vm968 = vcmp.lt.s32.totalorder %v227, 112
      %v969 = vsel %vm968, %v965, %v967
      %v970 = vsel %vm968, %v967, %v965
      %v971 = vsel %vm255, 1, 0
      %v972 = vsel %vm256, 1, 0
      %vm973 = vcmp.eq.s32.totalorder %v971, 1
      %vm974 = vcmp.eq.s32.totalorder %v972, 1
      %v975 = vsel %vm973, %v969, 0.0
      %v976 = vsel %vm974, %v970, 0.0
      %s977 = scalar_lea.vmem %s1, 112
      %v978 = vld [vmem:[%s977] sm:$0xf]
      %v979 = vld [vmem:[%s977 + $0x4] sm:$0xf]
      %v980 = vld [vmem:[%s977 + $0x8] sm:$0xf]
      %v981 = vld [vmem:[%s977 + $0xc] sm:$0xf]
      %v982 = vpack.c.bf16 %v975, %v975
      %v983 = vpack.c.bf16 %v976, %v976
      %v988 = vunpack.c.l.b16 %v978
      %v989 = vunpack.c.l.b16 %v979
      %v990 = vunpack.c.l.b16 %v980
      %v991 = vunpack.c.l.b16 %v981
      %v992 = vpack.c.b16 %v989, %v988
      %v993 = vpack.c.b16 %v991, %v990
      %v995 = vsel %vm320, %v992, 0
      %v998 = vsel %vm320, %v993, 0
      %v1001 = vsel %vm327, %v982, 0
      %v1004 = vsel %vm327, %v983, 0
      %1006 = vmatprep.subr.bf16.mxu0 0
      %1007 = vmatpush1.bf16.msra.mxu0 0
      %1008 = vmatprep.subr.bf16.mxu0 0
      %1009 = vmatpush1.bf16.msra.mxu0 0
      %1010 = vmatprep.subr.bf16.mxu0 0
      %1011 = vmatpush1.bf16.msra.mxu0 0
      %1012 = vmatprep.subr.bf16.mxu0 0
      %1013 = vmatpush1.bf16.msra.mxu0 0
      %1014 = vmatprep.subr.bf16.mxu0 0
      %1015 = vmatpush1.bf16.msra.mxu0 0
      %1016 = vmatprep.subr.bf16.mxu0 0
      %1017 = vmatpush1.bf16.msra.mxu0 0
      %1018 = vmatprep.subr.bf16.mxu0 0
      %1019 = vmatpush1.bf16.msra.mxu0 0
      %1020 = vmatprep.subr.bf16.mxu0 %v1004
      %1021 = vmatpush1.bf16.msra.mxu0 %v1001
      %1022 = vmatprep.subr.bf16.mxu0 0
      %1023 = vmatpush2.bf16.msra.mxu0 0
      %1024 = vmatprep.subr.bf16.mxu0 0
      %1025 = vmatpush2.bf16.msra.mxu0 0
      %1026 = vmatprep.subr.bf16.mxu0 0
      %1027 = vmatpush2.bf16.msra.mxu0 0
      %1028 = vmatprep.subr.bf16.mxu0 0
      %1029 = vmatpush2.bf16.msra.mxu0 0
      %1030 = vmatprep.subr.bf16.mxu0 0
      %1031 = vmatpush2.bf16.msra.mxu0 0
      %1032 = vmatprep.subr.bf16.mxu0 0
      %1033 = vmatpush2.bf16.msra.mxu0 0
      %1034 = vmatprep.subr.bf16.mxu0 0
      %1035 = vmatpush2.bf16.msra.mxu0 0
      %1036 = vmatprep.subr.bf16.mxu0 0
      %1037 = vmatpush2.bf16.msra.mxu0 0
      %1038 = vmatprep.mubr.bf16.mxu0 0
      %1039 = vmatmul.mubr.bf16.gmra.mxu0 %v995
      %v1040 = vpop.f32.mrf.mxu0
      %v1041 = vadd.f32 0.0, %v1040
      %v1042 = vpop.f32.mrf.mxu0
      %v1043 = vadd.f32 0.0, %v1042
      %v1044 = vpop.f32.mrf.mxu0
      %v1045 = vadd.f32 0.0, %v1044
      %v1046 = vpop.f32.mrf.mxu0
      %v1047 = vadd.f32 0.0, %v1046
      %1048 = vmatprep.mubr.bf16.mxu0 0
      %1049 = vmatmul.mubr.bf16.gmra.mxu0 %v998
      %v1050 = vpop.f32.mrf.mxu0
      %v1051 = vadd.f32 0.0, %v1050
      %v1052 = vpop.f32.mrf.mxu0
      %v1053 = vadd.f32 0.0, %v1052
      %v1054 = vpop.f32.mrf.mxu0
      %v1055 = vadd.f32 0.0, %v1054
      %v1056 = vpop.f32.mrf.mxu0
      %v1057 = vadd.f32 0.0, %v1056
      %1058 = vdwg.mxu0
      %v1059 = vadd.f32 %v956, %v1041
      %v1060 = vadd.f32 %v957, %v1043
      %v1061 = vadd.f32 %v958, %v1045
      %v1062 = vadd.f32 %v959, %v1047
      %v1063 = vadd.f32 %v960, %v1051
      %v1064 = vadd.f32 %v961, %v1053
      %v1065 = vadd.f32 %v962, %v1055
      %v1066 = vadd.f32 %v963, %v1057
      %1067 = vrot.lane.b32.xlu0 %v269, 111
      %v1068 = vpop.permute.xlu0 %1067
      %1069 = vrot.lane.b32.xlu0 %v270, 111
      %v1070 = vpop.permute.xlu0 %1069
      %vm1071 = vcmp.lt.s32.totalorder %v227, 111
      %v1072 = vsel %vm1071, %v1068, %v1070
      %v1073 = vsel %vm1071, %v1070, %v1068
      %v1074 = vsel %vm267, 1, 0
      %v1075 = vsel %vm268, 1, 0
      %vm1076 = vcmp.eq.s32.totalorder %v1074, 1
      %vm1077 = vcmp.eq.s32.totalorder %v1075, 1
      %v1078 = vsel %vm1076, %v1072, 0.0
      %v1079 = vsel %vm1077, %v1073, 0.0
      %s1080 = scalar_lea.vmem %s1, 128
      %v1081 = vld [vmem:[%s1080] sm:$0xf]
      %v1082 = vld [vmem:[%s1080 + $0x4] sm:$0xf]
      %v1083 = vld [vmem:[%s1080 + $0x8] sm:$0xf]
      %v1084 = vld [vmem:[%s1080 + $0xc] sm:$0xf]
      %v1085 = vpack.c.bf16 %v1078, %v1078
      %v1086 = vpack.c.bf16 %v1079, %v1079
      %v1091 = vunpack.c.l.b16 %v1081
      %v1092 = vunpack.c.l.b16 %v1082
      %v1093 = vunpack.c.l.b16 %v1083
      %v1094 = vunpack.c.l.b16 %v1084
      %v1095 = vpack.c.b16 %v1092, %v1091
      %v1096 = vpack.c.b16 %v1094, %v1093
      %v1098 = vsel %vm320, %v1095, 0
      %v1101 = vsel %vm320, %v1096, 0
      %v1104 = vsel %vm327, %v1085, 0
      %v1107 = vsel %vm327, %v1086, 0
      %1109 = vmatprep.subr.bf16.mxu0 0
      %1110 = vmatpush1.bf16.msra.mxu0 0
      %1111 = vmatprep.subr.bf16.mxu0 0
      %1112 = vmatpush1.bf16.msra.mxu0 0
      %1113 = vmatprep.subr.bf16.mxu0 0
      %1114 = vmatpush1.bf16.msra.mxu0 0
      %1115 = vmatprep.subr.bf16.mxu0 0
      %1116 = vmatpush1.bf16.msra.mxu0 0
      %1117 = vmatprep.subr.bf16.mxu0 0
      %1118 = vmatpush1.bf16.msra.mxu0 0
      %1119 = vmatprep.subr.bf16.mxu0 0
      %1120 = vmatpush1.bf16.msra.mxu0 0
      %1121 = vmatprep.subr.bf16.mxu0 0
      %1122 = vmatpush1.bf16.msra.mxu0 0
      %1123 = vmatprep.subr.bf16.mxu0 %v1107
      %1124 = vmatpush1.bf16.msra.mxu0 %v1104
      %1125 = vmatprep.subr.bf16.mxu0 0
      %1126 = vmatpush2.bf16.msra.mxu0 0
      %1127 = vmatprep.subr.bf16.mxu0 0
      %1128 = vmatpush2.bf16.msra.mxu0 0
      %1129 = vmatprep.subr.bf16.mxu0 0
      %1130 = vmatpush2.bf16.msra.mxu0 0
      %1131 = vmatprep.subr.bf16.mxu0 0
      %1132 = vmatpush2.bf16.msra.mxu0 0
      %1133 = vmatprep.subr.bf16.mxu0 0
      %1134 = vmatpush2.bf16.msra.mxu0 0
      %1135 = vmatprep.subr.bf16.mxu0 0
      %1136 = vmatpush2.bf16.msra.mxu0 0
      %1137 = vmatprep.subr.bf16.mxu0 0
      %1138 = vmatpush2.bf16.msra.mxu0 0
      %1139 = vmatprep.subr.bf16.mxu0 0
      %1140 = vmatpush2.bf16.msra.mxu0 0
      %1141 = vmatprep.mubr.bf16.mxu0 0
      %1142 = vmatmul.mubr.bf16.gmra.mxu0 %v1098
      %v1143 = vpop.f32.mrf.mxu0
      %v1144 = vadd.f32 0.0, %v1143
      %v1145 = vpop.f32.mrf.mxu0
      %v1146 = vadd.f32 0.0, %v1145
      %v1147 = vpop.f32.mrf.mxu0
      %v1148 = vadd.f32 0.0, %v1147
      %v1149 = vpop.f32.mrf.mxu0
      %v1150 = vadd.f32 0.0, %v1149
      %1151 = vmatprep.mubr.bf16.mxu0 0
      %1152 = vmatmul.mubr.bf16.gmra.mxu0 %v1101
      %v1153 = vpop.f32.mrf.mxu0
      %v1154 = vadd.f32 0.0, %v1153
      %v1155 = vpop.f32.mrf.mxu0
      %v1156 = vadd.f32 0.0, %v1155
      %v1157 = vpop.f32.mrf.mxu0
      %v1158 = vadd.f32 0.0, %v1157
      %v1159 = vpop.f32.mrf.mxu0
      %v1160 = vadd.f32 0.0, %v1159
      %1161 = vdwg.mxu0
      %v1162 = vadd.f32 %v1059, %v1144
      %v1163 = vadd.f32 %v1060, %v1146
      %v1164 = vadd.f32 %v1061, %v1148
      %v1165 = vadd.f32 %v1062, %v1150
      %v1166 = vadd.f32 %v1063, %v1154
      %v1167 = vadd.f32 %v1064, %v1156
      %v1168 = vadd.f32 %v1065, %v1158
      %v1169 = vadd.f32 %v1066, %v1160
      %v1170 = vld [vmem:[%s2] sm:$0xff]
      %v1171 = vld [vmem:[%s2 + $0x8] sm:$0xff]
      %v1172 = vld [vmem:[%s2 + $0x10] sm:$0xff]
      %v1173 = vld [vmem:[%s2 + $0x18] sm:$0xff]
      %1175 = vset.pattern.permute.xlu0 0
      %1176 = vperm.xlu0 %1175, %v1170
      %v1177 = vpop.permute.xlu0 %1176
      %1180 = vset.pattern.permute.xlu0 0
      %1181 = vperm.xlu0 %1180, %v1171
      %v1182 = vpop.permute.xlu0 %1181
      %1185 = vset.pattern.permute.xlu0 0
      %1186 = vperm.xlu0 %1185, %v1172
      %v1187 = vpop.permute.xlu0 %1186
      %1190 = vset.pattern.permute.xlu0 0
      %1191 = vperm.xlu0 %1190, %v1173
      %v1192 = vpop.permute.xlu0 %1191
      %v1194 = vadd.f32 %v1162, %v1177
      %v1195 = vadd.f32 %v1163, %v1177
      %v1196 = vadd.f32 %v1164, %v1182
      %v1197 = vadd.f32 %v1165, %v1182
      %v1198 = vadd.f32 %v1166, %v1187
      %v1199 = vadd.f32 %v1167, %v1187
      %v1200 = vadd.f32 %v1168, %v1192
      %v1201 = vadd.f32 %v1169, %v1192
      %v1202 = vmax.f32 %v1194, 0.0
      %v1203 = vmax.f32 %v1195, 0.0
      %v1204 = vmax.f32 %v1196, 0.0
      %v1205 = vmax.f32 %v1197, 0.0
      %v1206 = vmax.f32 %v1198, 0.0
      %v1207 = vmax.f32 %v1199, 0.0
      %v1208 = vmax.f32 %v1200, 0.0
      %v1209 = vmax.f32 %v1201, 0.0
      %1210 = vrot.lane.b32.xlu0 %v1202, 17
      %v1211 = vpop.permute.xlu0 %1210
      %1212 = vrot.lane.b32.xlu0 %v1204, 17
      %v1213 = vpop.permute.xlu0 %1212
      %1214 = vrot.lane.b32.xlu0 %v1206, 17
      %v1215 = vpop.permute.xlu0 %1214
      %1216 = vrot.lane.b32.xlu0 %v1208, 17
      %v1217 = vpop.permute.xlu0 %1216
      %1218 = vrot.lane.b32.xlu0 %v1203, 17
      %v1219 = vpop.permute.xlu0 %1218
      %1220 = vrot.lane.b32.xlu0 %v1205, 17
      %v1221 = vpop.permute.xlu0 %1220
      %1222 = vrot.lane.b32.xlu0 %v1207, 17
      %v1223 = vpop.permute.xlu0 %1222
      %1224 = vrot.lane.b32.xlu0 %v1209, 17
      %v1225 = vpop.permute.xlu0 %1224
      %v1226 = vsel %vm275, %v1211, %v1219
      %v1227 = vsel %vm275, %v1213, %v1221
      %v1228 = vsel %vm275, %v1215, %v1223
      %v1229 = vsel %vm275, %v1217, %v1225
      %v1230 = vsel %vm275, %v1219, %v1211
      %v1231 = vsel %vm275, %v1221, %v1213
      %v1232 = vsel %vm275, %v1223, %v1215
      %v1233 = vsel %vm275, %v1225, %v1217
      %v1234 = vsel %vm280, %v1230, 0.0
      %v1235 = vsel %vm281, %v1226, 0.0
      %v1236 = vsel %vm280, %v1231, 0.0
      %v1237 = vsel %vm281, %v1227, 0.0
      %v1238 = vsel %vm280, %v1232, 0.0
      %v1239 = vsel %vm281, %v1228, 0.0
      %v1240 = vsel %vm280, %v1233, 0.0
      %v1241 = vsel %vm281, %v1229, 0.0
      %v1242 = vld [vmem:[%s3] sm:$0xf]
      %v1243 = vld [vmem:[%s3 + $0x4] sm:$0xf]
      %v1244 = vld [vmem:[%s3 + $0x8] sm:$0xf]
      %v1245 = vld [vmem:[%s3 + $0xc] sm:$0xf]
      %v1246 = vpack.c.bf16 %v1236, %v1234
      %v1247 = vpack.c.bf16 %v1237, %v1235
      %v1248 = vpack.c.bf16 %v1240, %v1238
      %v1249 = vpack.c.bf16 %v1241, %v1239
      %1250 = vrot.lane.b32.xlu0 %v1202, 16
      %v1251 = vpop.permute.xlu0 %1250
      %1252 = vrot.lane.b32.xlu0 %v1204, 16
      %v1253 = vpop.permute.xlu0 %1252
      %1254 = vrot.lane.b32.xlu0 %v1206, 16
      %v1255 = vpop.permute.xlu0 %1254
      %1256 = vrot.lane.b32.xlu0 %v1208, 16
      %v1257 = vpop.permute.xlu0 %1256
      %1258 = vrot.lane.b32.xlu0 %v1203, 16
      %v1259 = vpop.permute.xlu0 %1258
      %1260 = vrot.lane.b32.xlu0 %v1205, 16
      %v1261 = vpop.permute.xlu0 %1260
      %1262 = vrot.lane.b32.xlu0 %v1207, 16
      %v1263 = vpop.permute.xlu0 %1262
      %1264 = vrot.lane.b32.xlu0 %v1209, 16
      %v1265 = vpop.permute.xlu0 %1264
      %v1266 = vsel %vm294, %v1251, %v1259
      %v1267 = vsel %vm294, %v1253, %v1261
      %v1268 = vsel %vm294, %v1255, %v1263
      %v1269 = vsel %vm294, %v1257, %v1265
      %v1270 = vsel %vm294, %v1259, %v1251
      %v1271 = vsel %vm294, %v1261, %v1253
      %v1272 = vsel %vm294, %v1263, %v1255
      %v1273 = vsel %vm294, %v1265, %v1257
      %v1274 = vsel %vm299, %v1270, 0.0
      %v1275 = vsel %vm300, %v1266, 0.0
      %v1276 = vsel %vm299, %v1271, 0.0
      %v1277 = vsel %vm300, %v1267, 0.0
      %v1278 = vsel %vm299, %v1272, 0.0
      %v1279 = vsel %vm300, %v1268, 0.0
      %v1280 = vsel %vm299, %v1273, 0.0
      %v1281 = vsel %vm300, %v1269, 0.0
      %s1282 = scalar_lea.vmem %s3, 16
      %v1283 = vld [vmem:[%s1282] sm:$0xf]
      %v1284 = vld [vmem:[%s1282 + $0x4] sm:$0xf]
      %v1285 = vld [vmem:[%s1282 + $0x8] sm:$0xf]
      %v1286 = vld [vmem:[%s1282 + $0xc] sm:$0xf]
      %v1287 = vpack.c.bf16 %v1276, %v1274
      %v1288 = vpack.c.bf16 %v1277, %v1275
      %v1289 = vpack.c.bf16 %v1280, %v1278
      %v1290 = vpack.c.bf16 %v1281, %v1279
      %v1295 = vunpack.c.l.b16 %v1283
      %v1296 = vunpack.c.l.b16 %v1284
      %v1297 = vunpack.c.l.b16 %v1285
      %v1298 = vunpack.c.l.b16 %v1286
      %v1299 = vpack.c.b16 %v1296, %v1295
      %v1300 = vpack.c.b16 %v1298, %v1297
      %vm1301 = vcmask 261120
      %v1303 = vsel %vm1301, %v1299, 0
      %v1306 = vsel %vm1301, %v1300, 0
      %1308 = vmatprep.subr.bf16.mxu0 0
      %1309 = vmatpush1.bf16.msra.mxu0 0
      %1310 = vmatprep.subr.bf16.mxu0 0
      %1311 = vmatpush1.bf16.msra.mxu0 0
      %1312 = vmatprep.subr.bf16.mxu0 0
      %1313 = vmatpush1.bf16.msra.mxu0 0
      %1314 = vmatprep.subr.bf16.mxu0 0
      %1315 = vmatpush1.bf16.msra.mxu0 0
      %1316 = vmatprep.subr.bf16.mxu0 0
      %1317 = vmatpush1.bf16.msra.mxu0 0
      %1318 = vmatprep.subr.bf16.mxu0 0
      %1319 = vmatpush1.bf16.msra.mxu0 0
      %1320 = vmatprep.subr.bf16.mxu0 %v1290
      %1321 = vmatpush1.bf16.msra.mxu0 %v1289
      %1322 = vmatprep.subr.bf16.mxu0 %v1288
      %1323 = vmatpush1.bf16.msra.mxu0 %v1287
      %1324 = vmatprep.subr.bf16.mxu0 0
      %1325 = vmatpush2.bf16.msra.mxu0 0
      %1326 = vmatprep.subr.bf16.mxu0 0
      %1327 = vmatpush2.bf16.msra.mxu0 0
      %1328 = vmatprep.subr.bf16.mxu0 0
      %1329 = vmatpush2.bf16.msra.mxu0 0
      %1330 = vmatprep.subr.bf16.mxu0 0
      %1331 = vmatpush2.bf16.msra.mxu0 0
      %1332 = vmatprep.subr.bf16.mxu0 0
      %1333 = vmatpush2.bf16.msra.mxu0 0
      %1334 = vmatprep.subr.bf16.mxu0 0
      %1335 = vmatpush2.bf16.msra.mxu0 0
      %1336 = vmatprep.subr.bf16.mxu0 0
      %1337 = vmatpush2.bf16.msra.mxu0 0
      %1338 = vmatprep.subr.bf16.mxu0 0
      %1339 = vmatpush2.bf16.msra.mxu0 0
      %1340 = vmatprep.mubr.bf16.mxu0 0
      %1341 = vmatmul.mubr.bf16.gmra.mxu0 %v1303
      %v1342 = vpop.f32.mrf.mxu0
      %v1343 = vadd.f32 0.0, %v1342
      %v1344 = vpop.f32.mrf.mxu0
      %v1345 = vadd.f32 0.0, %v1344
      %v1346 = vpop.f32.mrf.mxu0
      %v1347 = vadd.f32 0.0, %v1346
      %v1348 = vpop.f32.mrf.mxu0
      %v1349 = vadd.f32 0.0, %v1348
      %1350 = vmatprep.mubr.bf16.mxu0 0
      %1351 = vmatmul.mubr.bf16.gmra.mxu0 %v1306
      %v1352 = vpop.f32.mrf.mxu0
      %v1353 = vadd.f32 0.0, %v1352
      %v1354 = vpop.f32.mrf.mxu0
      %v1355 = vadd.f32 0.0, %v1354
      %v1356 = vpop.f32.mrf.mxu0
      %v1357 = vadd.f32 0.0, %v1356
      %v1358 = vpop.f32.mrf.mxu0
      %v1359 = vadd.f32 0.0, %v1358
      %1360 = vdwg.mxu0
      %v1365 = vunpack.c.l.b16 %v1242
      %v1366 = vunpack.c.l.b16 %v1243
      %v1367 = vunpack.c.l.b16 %v1244
      %v1368 = vunpack.c.l.b16 %v1245
      %v1369 = vpack.c.b16 %v1366, %v1365
      %v1370 = vpack.c.b16 %v1368, %v1367
      %v1372 = vsel %vm1301, %v1369, 0
      %v1375 = vsel %vm1301, %v1370, 0
      %1377 = vmatprep.subr.bf16.mxu0 0
      %1378 = vmatpush1.bf16.msra.mxu0 0
      %1379 = vmatprep.subr.bf16.mxu0 0
      %1380 = vmatpush1.bf16.msra.mxu0 0
      %1381 = vmatprep.subr.bf16.mxu0 0
      %1382 = vmatpush1.bf16.msra.mxu0 0
      %1383 = vmatprep.subr.bf16.mxu0 0
      %1384 = vmatpush1.bf16.msra.mxu0 0
      %1385 = vmatprep.subr.bf16.mxu0 0
      %1386 = vmatpush1.bf16.msra.mxu0 0
      %1387 = vmatprep.subr.bf16.mxu0 0
      %1388 = vmatpush1.bf16.msra.mxu0 0
      %1389 = vmatprep.subr.bf16.mxu0 %v1249
      %1390 = vmatpush1.bf16.msra.mxu0 %v1248
      %1391 = vmatprep.subr.bf16.mxu0 %v1247
      %1392 = vmatpush1.bf16.msra.mxu0 %v1246
      %1393 = vmatprep.subr.bf16.mxu0 0
      %1394 = vmatpush2.bf16.msra.mxu0 0
      %1395 = vmatprep.subr.bf16.mxu0 0
      %1396 = vmatpush2.bf16.msra.mxu0 0
      %1397 = vmatprep.subr.bf16.mxu0 0
      %1398 = vmatpush2.bf16.msra.mxu0 0
      %1399 = vmatprep.subr.bf16.mxu0 0
      %1400 = vmatpush2.bf16.msra.mxu0 0
      %1401 = vmatprep.subr.bf16.mxu0 0
      %1402 = vmatpush2.bf16.msra.mxu0 0
      %1403 = vmatprep.subr.bf16.mxu0 0
      %1404 = vmatpush2.bf16.msra.mxu0 0
      %1405 = vmatprep.subr.bf16.mxu0 0
      %1406 = vmatpush2.bf16.msra.mxu0 0
      %1407 = vmatprep.subr.bf16.mxu0 0
      %1408 = vmatpush2.bf16.msra.mxu0 0
      %1409 = vmatprep.mubr.bf16.mxu0 0
      %1410 = vmatmul.mubr.bf16.gmra.mxu0 %v1372
      %v1411 = vpop.f32.mrf.mxu0
      %v1412 = vadd.f32 %v1343, %v1411
      %v1413 = vpop.f32.mrf.mxu0
      %v1414 = vadd.f32 %v1345, %v1413
      %v1415 = vpop.f32.mrf.mxu0
      %v1416 = vadd.f32 %v1347, %v1415
      %v1417 = vpop.f32.mrf.mxu0
      %v1418 = vadd.f32 %v1349, %v1417
      %1419 = vmatprep.mubr.bf16.mxu0 0
      %1420 = vmatmul.mubr.bf16.gmra.mxu0 %v1375
      %v1421 = vpop.f32.mrf.mxu0
      %v1422 = vadd.f32 %v1353, %v1421
      %v1423 = vpop.f32.mrf.mxu0
      %v1424 = vadd.f32 %v1355, %v1423
      %v1425 = vpop.f32.mrf.mxu0
      %v1426 = vadd.f32 %v1357, %v1425
      %v1427 = vpop.f32.mrf.mxu0
      %v1428 = vadd.f32 %v1359, %v1427
      %1429 = vdwg.mxu0
      %1430 = vrot.lane.b32.xlu0 %v1202, 15
      %v1431 = vpop.permute.xlu0 %1430
      %1432 = vrot.lane.b32.xlu0 %v1204, 15
      %v1433 = vpop.permute.xlu0 %1432
      %1434 = vrot.lane.b32.xlu0 %v1206, 15
      %v1435 = vpop.permute.xlu0 %1434
      %1436 = vrot.lane.b32.xlu0 %v1208, 15
      %v1437 = vpop.permute.xlu0 %1436
      %1438 = vrot.lane.b32.xlu0 %v1203, 15
      %v1439 = vpop.permute.xlu0 %1438
      %1440 = vrot.lane.b32.xlu0 %v1205, 15
      %v1441 = vpop.permute.xlu0 %1440
      %1442 = vrot.lane.b32.xlu0 %v1207, 15
      %v1443 = vpop.permute.xlu0 %1442
      %1444 = vrot.lane.b32.xlu0 %v1209, 15
      %v1445 = vpop.permute.xlu0 %1444
      %v1446 = vsel %vm466, %v1431, %v1439
      %v1447 = vsel %vm466, %v1433, %v1441
      %v1448 = vsel %vm466, %v1435, %v1443
      %v1449 = vsel %vm466, %v1437, %v1445
      %v1450 = vsel %vm466, %v1439, %v1431
      %v1451 = vsel %vm466, %v1441, %v1433
      %v1452 = vsel %vm466, %v1443, %v1435
      %v1453 = vsel %vm466, %v1445, %v1437
      %v1454 = vsel %vm471, %v1450, 0.0
      %v1455 = vsel %vm472, %v1446, 0.0
      %v1456 = vsel %vm471, %v1451, 0.0
      %v1457 = vsel %vm472, %v1447, 0.0
      %v1458 = vsel %vm471, %v1452, 0.0
      %v1459 = vsel %vm472, %v1448, 0.0
      %v1460 = vsel %vm471, %v1453, 0.0
      %v1461 = vsel %vm472, %v1449, 0.0
      %s1462 = scalar_lea.vmem %s3, 32
      %v1463 = vld [vmem:[%s1462] sm:$0xf]
      %v1464 = vld [vmem:[%s1462 + $0x4] sm:$0xf]
      %v1465 = vld [vmem:[%s1462 + $0x8] sm:$0xf]
      %v1466 = vld [vmem:[%s1462 + $0xc] sm:$0xf]
      %v1467 = vpack.c.bf16 %v1456, %v1454
      %v1468 = vpack.c.bf16 %v1457, %v1455
      %v1469 = vpack.c.bf16 %v1460, %v1458
      %v1470 = vpack.c.bf16 %v1461, %v1459
      %v1475 = vunpack.c.l.b16 %v1463
      %v1476 = vunpack.c.l.b16 %v1464
      %v1477 = vunpack.c.l.b16 %v1465
      %v1478 = vunpack.c.l.b16 %v1466
      %v1479 = vpack.c.b16 %v1476, %v1475
      %v1480 = vpack.c.b16 %v1478, %v1477
      %v1482 = vsel %vm1301, %v1479, 0
      %v1485 = vsel %vm1301, %v1480, 0
      %1487 = vmatprep.subr.bf16.mxu0 0
      %1488 = vmatpush1.bf16.msra.mxu0 0
      %1489 = vmatprep.subr.bf16.mxu0 0
      %1490 = vmatpush1.bf16.msra.mxu0 0
      %1491 = vmatprep.subr.bf16.mxu0 0
      %1492 = vmatpush1.bf16.msra.mxu0 0
      %1493 = vmatprep.subr.bf16.mxu0 0
      %1494 = vmatpush1.bf16.msra.mxu0 0
      %1495 = vmatprep.subr.bf16.mxu0 0
      %1496 = vmatpush1.bf16.msra.mxu0 0
      %1497 = vmatprep.subr.bf16.mxu0 0
      %1498 = vmatpush1.bf16.msra.mxu0 0
      %1499 = vmatprep.subr.bf16.mxu0 %v1470
      %1500 = vmatpush1.bf16.msra.mxu0 %v1469
      %1501 = vmatprep.subr.bf16.mxu0 %v1468
      %1502 = vmatpush1.bf16.msra.mxu0 %v1467
      %1503 = vmatprep.subr.bf16.mxu0 0
      %1504 = vmatpush2.bf16.msra.mxu0 0
      %1505 = vmatprep.subr.bf16.mxu0 0
      %1506 = vmatpush2.bf16.msra.mxu0 0
      %1507 = vmatprep.subr.bf16.mxu0 0
      %1508 = vmatpush2.bf16.msra.mxu0 0
      %1509 = vmatprep.subr.bf16.mxu0 0
      %1510 = vmatpush2.bf16.msra.mxu0 0
      %1511 = vmatprep.subr.bf16.mxu0 0
      %1512 = vmatpush2.bf16.msra.mxu0 0
      %1513 = vmatprep.subr.bf16.mxu0 0
      %1514 = vmatpush2.bf16.msra.mxu0 0
      %1515 = vmatprep.subr.bf16.mxu0 0
      %1516 = vmatpush2.bf16.msra.mxu0 0
      %1517 = vmatprep.subr.bf16.mxu0 0
      %1518 = vmatpush2.bf16.msra.mxu0 0
      %1519 = vmatprep.mubr.bf16.mxu0 0
      %1520 = vmatmul.mubr.bf16.gmra.mxu0 %v1482
      %v1521 = vpop.f32.mrf.mxu0
      %v1522 = vadd.f32 0.0, %v1521
      %v1523 = vpop.f32.mrf.mxu0
      %v1524 = vadd.f32 0.0, %v1523
      %v1525 = vpop.f32.mrf.mxu0
      %v1526 = vadd.f32 0.0, %v1525
      %v1527 = vpop.f32.mrf.mxu0
      %v1528 = vadd.f32 0.0, %v1527
      %1529 = vmatprep.mubr.bf16.mxu0 0
      %1530 = vmatmul.mubr.bf16.gmra.mxu0 %v1485
      %v1531 = vpop.f32.mrf.mxu0
      %v1532 = vadd.f32 0.0, %v1531
      %v1533 = vpop.f32.mrf.mxu0
      %v1534 = vadd.f32 0.0, %v1533
      %v1535 = vpop.f32.mrf.mxu0
      %v1536 = vadd.f32 0.0, %v1535
      %v1537 = vpop.f32.mrf.mxu0
      %v1538 = vadd.f32 0.0, %v1537
      %1539 = vdwg.mxu0
      %v1540 = vadd.f32 %v1412, %v1522
      %v1541 = vadd.f32 %v1414, %v1524
      %v1542 = vadd.f32 %v1416, %v1526
      %v1543 = vadd.f32 %v1418, %v1528
      %v1544 = vadd.f32 %v1422, %v1532
      %v1545 = vadd.f32 %v1424, %v1534
      %v1546 = vadd.f32 %v1426, %v1536
      %v1547 = vadd.f32 %v1428, %v1538
      %1548 = vrot.lane.b32.xlu0 %v1202, 1
      %v1549 = vpop.permute.xlu0 %1548
      %1550 = vrot.lane.b32.xlu0 %v1204, 1
      %v1551 = vpop.permute.xlu0 %1550
      %1552 = vrot.lane.b32.xlu0 %v1206, 1
      %v1553 = vpop.permute.xlu0 %1552
      %1554 = vrot.lane.b32.xlu0 %v1208, 1
      %v1555 = vpop.permute.xlu0 %1554
      %1556 = vrot.lane.b32.xlu0 %v1203, 1
      %v1557 = vpop.permute.xlu0 %1556
      %1558 = vrot.lane.b32.xlu0 %v1205, 1
      %v1559 = vpop.permute.xlu0 %1558
      %1560 = vrot.lane.b32.xlu0 %v1207, 1
      %v1561 = vpop.permute.xlu0 %1560
      %1562 = vrot.lane.b32.xlu0 %v1209, 1
      %v1563 = vpop.permute.xlu0 %1562
      %v1564 = vsel %vm569, %v1549, %v1557
      %v1565 = vsel %vm569, %v1551, %v1559
      %v1566 = vsel %vm569, %v1553, %v1561
      %v1567 = vsel %vm569, %v1555, %v1563
      %v1568 = vsel %vm569, %v1557, %v1549
      %v1569 = vsel %vm569, %v1559, %v1551
      %v1570 = vsel %vm569, %v1561, %v1553
      %v1571 = vsel %vm569, %v1563, %v1555
      %v1572 = vsel %vm574, %v1568, 0.0
      %v1573 = vsel %vm575, %v1564, 0.0
      %v1574 = vsel %vm574, %v1569, 0.0
      %v1575 = vsel %vm575, %v1565, 0.0
      %v1576 = vsel %vm574, %v1570, 0.0
      %v1577 = vsel %vm575, %v1566, 0.0
      %v1578 = vsel %vm574, %v1571, 0.0
      %v1579 = vsel %vm575, %v1567, 0.0
      %s1580 = scalar_lea.vmem %s3, 48
      %v1581 = vld [vmem:[%s1580] sm:$0xf]
      %v1582 = vld [vmem:[%s1580 + $0x4] sm:$0xf]
      %v1583 = vld [vmem:[%s1580 + $0x8] sm:$0xf]
      %v1584 = vld [vmem:[%s1580 + $0xc] sm:$0xf]
      %v1585 = vpack.c.bf16 %v1574, %v1572
      %v1586 = vpack.c.bf16 %v1575, %v1573
      %v1587 = vpack.c.bf16 %v1578, %v1576
      %v1588 = vpack.c.bf16 %v1579, %v1577
      %v1593 = vunpack.c.l.b16 %v1581
      %v1594 = vunpack.c.l.b16 %v1582
      %v1595 = vunpack.c.l.b16 %v1583
      %v1596 = vunpack.c.l.b16 %v1584
      %v1597 = vpack.c.b16 %v1594, %v1593
      %v1598 = vpack.c.b16 %v1596, %v1595
      %v1600 = vsel %vm1301, %v1597, 0
      %v1603 = vsel %vm1301, %v1598, 0
      %1605 = vmatprep.subr.bf16.mxu0 0
      %1606 = vmatpush1.bf16.msra.mxu0 0
      %1607 = vmatprep.subr.bf16.mxu0 0
      %1608 = vmatpush1.bf16.msra.mxu0 0
      %1609 = vmatprep.subr.bf16.mxu0 0
      %1610 = vmatpush1.bf16.msra.mxu0 0
      %1611 = vmatprep.subr.bf16.mxu0 0
      %1612 = vmatpush1.bf16.msra.mxu0 0
      %1613 = vmatprep.subr.bf16.mxu0 0
      %1614 = vmatpush1.bf16.msra.mxu0 0
      %1615 = vmatprep.subr.bf16.mxu0 0
      %1616 = vmatpush1.bf16.msra.mxu0 0
      %1617 = vmatprep.subr.bf16.mxu0 %v1588
      %1618 = vmatpush1.bf16.msra.mxu0 %v1587
      %1619 = vmatprep.subr.bf16.mxu0 %v1586
      %1620 = vmatpush1.bf16.msra.mxu0 %v1585
      %1621 = vmatprep.subr.bf16.mxu0 0
      %1622 = vmatpush2.bf16.msra.mxu0 0
      %1623 = vmatprep.subr.bf16.mxu0 0
      %1624 = vmatpush2.bf16.msra.mxu0 0
      %1625 = vmatprep.subr.bf16.mxu0 0
      %1626 = vmatpush2.bf16.msra.mxu0 0
      %1627 = vmatprep.subr.bf16.mxu0 0
      %1628 = vmatpush2.bf16.msra.mxu0 0
      %1629 = vmatprep.subr.bf16.mxu0 0
      %1630 = vmatpush2.bf16.msra.mxu0 0
      %1631 = vmatprep.subr.bf16.mxu0 0
      %1632 = vmatpush2.bf16.msra.mxu0 0
      %1633 = vmatprep.subr.bf16.mxu0 0
      %1634 = vmatpush2.bf16.msra.mxu0 0
      %1635 = vmatprep.subr.bf16.mxu0 0
      %1636 = vmatpush2.bf16.msra.mxu0 0
      %1637 = vmatprep.mubr.bf16.mxu0 0
      %1638 = vmatmul.mubr.bf16.gmra.mxu0 %v1600
      %v1639 = vpop.f32.mrf.mxu0
      %v1640 = vadd.f32 0.0, %v1639
      %v1641 = vpop.f32.mrf.mxu0
      %v1642 = vadd.f32 0.0, %v1641
      %v1643 = vpop.f32.mrf.mxu0
      %v1644 = vadd.f32 0.0, %v1643
      %v1645 = vpop.f32.mrf.mxu0
      %v1646 = vadd.f32 0.0, %v1645
      %1647 = vmatprep.mubr.bf16.mxu0 0
      %1648 = vmatmul.mubr.bf16.gmra.mxu0 %v1603
      %v1649 = vpop.f32.mrf.mxu0
      %v1650 = vadd.f32 0.0, %v1649
      %v1651 = vpop.f32.mrf.mxu0
      %v1652 = vadd.f32 0.0, %v1651
      %v1653 = vpop.f32.mrf.mxu0
      %v1654 = vadd.f32 0.0, %v1653
      %v1655 = vpop.f32.mrf.mxu0
      %v1656 = vadd.f32 0.0, %v1655
      %1657 = vdwg.mxu0
      %v1658 = vadd.f32 %v1540, %v1640
      %v1659 = vadd.f32 %v1541, %v1642
      %v1660 = vadd.f32 %v1542, %v1644
      %v1661 = vadd.f32 %v1543, %v1646
      %v1662 = vadd.f32 %v1544, %v1650
      %v1663 = vadd.f32 %v1545, %v1652
      %v1664 = vadd.f32 %v1546, %v1654
      %v1665 = vadd.f32 %v1547, %v1656
      %s1666 = scalar_lea.vmem %s3, 64
      %v1667 = vld [vmem:[%s1666] sm:$0xf]
      %v1668 = vld [vmem:[%s1666 + $0x4] sm:$0xf]
      %v1669 = vld [vmem:[%s1666 + $0x8] sm:$0xf]
      %v1670 = vld [vmem:[%s1666 + $0xc] sm:$0xf]
      %v1671 = vpack.c.bf16 %v1204, %v1202
      %v1672 = vpack.c.bf16 %v1205, %v1203
      %v1673 = vpack.c.bf16 %v1208, %v1206
      %v1674 = vpack.c.bf16 %v1209, %v1207
      %v1679 = vunpack.c.l.b16 %v1667
      %v1680 = vunpack.c.l.b16 %v1668
      %v1681 = vunpack.c.l.b16 %v1669
      %v1682 = vunpack.c.l.b16 %v1670
      %v1683 = vpack.c.b16 %v1680, %v1679
      %v1684 = vpack.c.b16 %v1682, %v1681
      %v1686 = vsel %vm1301, %v1683, 0
      %v1689 = vsel %vm1301, %v1684, 0
      %1691 = vmatprep.subr.bf16.mxu0 0
      %1692 = vmatpush1.bf16.msra.mxu0 0
      %1693 = vmatprep.subr.bf16.mxu0 0
      %1694 = vmatpush1.bf16.msra.mxu0 0
      %1695 = vmatprep.subr.bf16.mxu0 0
      %1696 = vmatpush1.bf16.msra.mxu0 0
      %1697 = vmatprep.subr.bf16.mxu0 0
      %1698 = vmatpush1.bf16.msra.mxu0 0
      %1699 = vmatprep.subr.bf16.mxu0 0
      %1700 = vmatpush1.bf16.msra.mxu0 0
      %1701 = vmatprep.subr.bf16.mxu0 0
      %1702 = vmatpush1.bf16.msra.mxu0 0
      %1703 = vmatprep.subr.bf16.mxu0 %v1674
      %1704 = vmatpush1.bf16.msra.mxu0 %v1673
      %1705 = vmatprep.subr.bf16.mxu0 %v1672
      %1706 = vmatpush1.bf16.msra.mxu0 %v1671
      %1707 = vmatprep.subr.bf16.mxu0 0
      %1708 = vmatpush2.bf16.msra.mxu0 0
      %1709 = vmatprep.subr.bf16.mxu0 0
      %1710 = vmatpush2.bf16.msra.mxu0 0
      %1711 = vmatprep.subr.bf16.mxu0 0
      %1712 = vmatpush2.bf16.msra.mxu0 0
      %1713 = vmatprep.subr.bf16.mxu0 0
      %1714 = vmatpush2.bf16.msra.mxu0 0
      %1715 = vmatprep.subr.bf16.mxu0 0
      %1716 = vmatpush2.bf16.msra.mxu0 0
      %1717 = vmatprep.subr.bf16.mxu0 0
      %1718 = vmatpush2.bf16.msra.mxu0 0
      %1719 = vmatprep.subr.bf16.mxu0 0
      %1720 = vmatpush2.bf16.msra.mxu0 0
      %1721 = vmatprep.subr.bf16.mxu0 0
      %1722 = vmatpush2.bf16.msra.mxu0 0
      %1723 = vmatprep.mubr.bf16.mxu0 0
      %1724 = vmatmul.mubr.bf16.gmra.mxu0 %v1686
      %v1725 = vpop.f32.mrf.mxu0
      %v1726 = vadd.f32 0.0, %v1725
      %v1727 = vpop.f32.mrf.mxu0
      %v1728 = vadd.f32 0.0, %v1727
      %v1729 = vpop.f32.mrf.mxu0
      %v1730 = vadd.f32 0.0, %v1729
      %v1731 = vpop.f32.mrf.mxu0
      %v1732 = vadd.f32 0.0, %v1731
      %1733 = vmatprep.mubr.bf16.mxu0 0
      %1734 = vmatmul.mubr.bf16.gmra.mxu0 %v1689
      %v1735 = vpop.f32.mrf.mxu0
      %v1736 = vadd.f32 0.0, %v1735
      %v1737 = vpop.f32.mrf.mxu0
      %v1738 = vadd.f32 0.0, %v1737
      %v1739 = vpop.f32.mrf.mxu0
      %v1740 = vadd.f32 0.0, %v1739
      %v1741 = vpop.f32.mrf.mxu0
      %v1742 = vadd.f32 0.0, %v1741
      %1743 = vdwg.mxu0
      %v1744 = vadd.f32 %v1658, %v1726
      %v1745 = vadd.f32 %v1659, %v1728
      %v1746 = vadd.f32 %v1660, %v1730
      %v1747 = vadd.f32 %v1661, %v1732
      %v1748 = vadd.f32 %v1662, %v1736
      %v1749 = vadd.f32 %v1663, %v1738
      %v1750 = vadd.f32 %v1664, %v1740
      %v1751 = vadd.f32 %v1665, %v1742
      %1752 = vrot.lane.b32.xlu0 %v1202, 127
      %v1753 = vpop.permute.xlu0 %1752
      %1754 = vrot.lane.b32.xlu0 %v1204, 127
      %v1755 = vpop.permute.xlu0 %1754
      %1756 = vrot.lane.b32.xlu0 %v1206, 127
      %v1757 = vpop.permute.xlu0 %1756
      %1758 = vrot.lane.b32.xlu0 %v1208, 127
      %v1759 = vpop.permute.xlu0 %1758
      %1760 = vrot.lane.b32.xlu0 %v1203, 127
      %v1761 = vpop.permute.xlu0 %1760
      %1762 = vrot.lane.b32.xlu0 %v1205, 127
      %v1763 = vpop.permute.xlu0 %1762
      %1764 = vrot.lane.b32.xlu0 %v1207, 127
      %v1765 = vpop.permute.xlu0 %1764
      %1766 = vrot.lane.b32.xlu0 %v1209, 127
      %v1767 = vpop.permute.xlu0 %1766
      %v1768 = vsel %vm762, %v1753, %v1761
      %v1769 = vsel %vm762, %v1755, %v1763
      %v1770 = vsel %vm762, %v1757, %v1765
      %v1771 = vsel %vm762, %v1759, %v1767
      %v1772 = vsel %vm762, %v1761, %v1753
      %v1773 = vsel %vm762, %v1763, %v1755
      %v1774 = vsel %vm762, %v1765, %v1757
      %v1775 = vsel %vm762, %v1767, %v1759
      %v1776 = vsel %vm767, %v1768, 0.0
      %v1777 = vsel %vm768, %v1772, 0.0
      %v1778 = vsel %vm767, %v1769, 0.0
      %v1779 = vsel %vm768, %v1773, 0.0
      %v1780 = vsel %vm767, %v1770, 0.0
      %v1781 = vsel %vm768, %v1774, 0.0
      %v1782 = vsel %vm767, %v1771, 0.0
      %v1783 = vsel %vm768, %v1775, 0.0
      %s1784 = scalar_lea.vmem %s3, 80
      %v1785 = vld [vmem:[%s1784] sm:$0xf]
      %v1786 = vld [vmem:[%s1784 + $0x4] sm:$0xf]
      %v1787 = vld [vmem:[%s1784 + $0x8] sm:$0xf]
      %v1788 = vld [vmem:[%s1784 + $0xc] sm:$0xf]
      %v1789 = vpack.c.bf16 %v1778, %v1776
      %v1790 = vpack.c.bf16 %v1779, %v1777
      %v1791 = vpack.c.bf16 %v1782, %v1780
      %v1792 = vpack.c.bf16 %v1783, %v1781
      %v1797 = vunpack.c.l.b16 %v1785
      %v1798 = vunpack.c.l.b16 %v1786
      %v1799 = vunpack.c.l.b16 %v1787
      %v1800 = vunpack.c.l.b16 %v1788
      %v1801 = vpack.c.b16 %v1798, %v1797
      %v1802 = vpack.c.b16 %v1800, %v1799
      %v1804 = vsel %vm1301, %v1801, 0
      %v1807 = vsel %vm1301, %v1802, 0
      %1809 = vmatprep.subr.bf16.mxu0 0
      %1810 = vmatpush1.bf16.msra.mxu0 0
      %1811 = vmatprep.subr.bf16.mxu0 0
      %1812 = vmatpush1.bf16.msra.mxu0 0
      %1813 = vmatprep.subr.bf16.mxu0 0
      %1814 = vmatpush1.bf16.msra.mxu0 0
      %1815 = vmatprep.subr.bf16.mxu0 0
      %1816 = vmatpush1.bf16.msra.mxu0 0
      %1817 = vmatprep.subr.bf16.mxu0 0
      %1818 = vmatpush1.bf16.msra.mxu0 0
      %1819 = vmatprep.subr.bf16.mxu0 0
      %1820 = vmatpush1.bf16.msra.mxu0 0
      %1821 = vmatprep.subr.bf16.mxu0 %v1792
      %1822 = vmatpush1.bf16.msra.mxu0 %v1791
      %1823 = vmatprep.subr.bf16.mxu0 %v1790
      %1824 = vmatpush1.bf16.msra.mxu0 %v1789
      %1825 = vmatprep.subr.bf16.mxu0 0
      %1826 = vmatpush2.bf16.msra.mxu0 0
      %1827 = vmatprep.subr.bf16.mxu0 0
      %1828 = vmatpush2.bf16.msra.mxu0 0
      %1829 = vmatprep.subr.bf16.mxu0 0
      %1830 = vmatpush2.bf16.msra.mxu0 0
      %1831 = vmatprep.subr.bf16.mxu0 0
      %1832 = vmatpush2.bf16.msra.mxu0 0
      %1833 = vmatprep.subr.bf16.mxu0 0
      %1834 = vmatpush2.bf16.msra.mxu0 0
      %1835 = vmatprep.subr.bf16.mxu0 0
      %1836 = vmatpush2.bf16.msra.mxu0 0
      %1837 = vmatprep.subr.bf16.mxu0 0
      %1838 = vmatpush2.bf16.msra.mxu0 0
      %1839 = vmatprep.subr.bf16.mxu0 0
      %1840 = vmatpush2.bf16.msra.mxu0 0
      %1841 = vmatprep.mubr.bf16.mxu0 0
      %1842 = vmatmul.mubr.bf16.gmra.mxu0 %v1804
      %v1843 = vpop.f32.mrf.mxu0
      %v1844 = vadd.f32 0.0, %v1843
      %v1845 = vpop.f32.mrf.mxu0
      %v1846 = vadd.f32 0.0, %v1845
      %v1847 = vpop.f32.mrf.mxu0
      %v1848 = vadd.f32 0.0, %v1847
      %v1849 = vpop.f32.mrf.mxu0
      %v1850 = vadd.f32 0.0, %v1849
      %1851 = vmatprep.mubr.bf16.mxu0 0
      %1852 = vmatmul.mubr.bf16.gmra.mxu0 %v1807
      %v1853 = vpop.f32.mrf.mxu0
      %v1854 = vadd.f32 0.0, %v1853
      %v1855 = vpop.f32.mrf.mxu0
      %v1856 = vadd.f32 0.0, %v1855
      %v1857 = vpop.f32.mrf.mxu0
      %v1858 = vadd.f32 0.0, %v1857
      %v1859 = vpop.f32.mrf.mxu0
      %v1860 = vadd.f32 0.0, %v1859
      %1861 = vdwg.mxu0
      %v1862 = vadd.f32 %v1744, %v1844
      %v1863 = vadd.f32 %v1745, %v1846
      %v1864 = vadd.f32 %v1746, %v1848
      %v1865 = vadd.f32 %v1747, %v1850
      %v1866 = vadd.f32 %v1748, %v1854
      %v1867 = vadd.f32 %v1749, %v1856
      %v1868 = vadd.f32 %v1750, %v1858
      %v1869 = vadd.f32 %v1751, %v1860
      %1870 = vrot.lane.b32.xlu0 %v1202, 113
      %v1871 = vpop.permute.xlu0 %1870
      %1872 = vrot.lane.b32.xlu0 %v1204, 113
      %v1873 = vpop.permute.xlu0 %1872
      %1874 = vrot.lane.b32.xlu0 %v1206, 113
      %v1875 = vpop.permute.xlu0 %1874
      %1876 = vrot.lane.b32.xlu0 %v1208, 113
      %v1877 = vpop.permute.xlu0 %1876
      %1878 = vrot.lane.b32.xlu0 %v1203, 113
      %v1879 = vpop.permute.xlu0 %1878
      %1880 = vrot.lane.b32.xlu0 %v1205, 113
      %v1881 = vpop.permute.xlu0 %1880
      %1882 = vrot.lane.b32.xlu0 %v1207, 113
      %v1883 = vpop.permute.xlu0 %1882
      %1884 = vrot.lane.b32.xlu0 %v1209, 113
      %v1885 = vpop.permute.xlu0 %1884
      %v1886 = vsel %vm865, %v1871, %v1879
      %v1887 = vsel %vm865, %v1873, %v1881
      %v1888 = vsel %vm865, %v1875, %v1883
      %v1889 = vsel %vm865, %v1877, %v1885
      %v1890 = vsel %vm865, %v1879, %v1871
      %v1891 = vsel %vm865, %v1881, %v1873
      %v1892 = vsel %vm865, %v1883, %v1875
      %v1893 = vsel %vm865, %v1885, %v1877
      %v1894 = vsel %vm870, %v1886, 0.0
      %v1895 = vsel %vm871, %v1890, 0.0
      %v1896 = vsel %vm870, %v1887, 0.0
      %v1897 = vsel %vm871, %v1891, 0.0
      %v1898 = vsel %vm870, %v1888, 0.0
      %v1899 = vsel %vm871, %v1892, 0.0
      %v1900 = vsel %vm870, %v1889, 0.0
      %v1901 = vsel %vm871, %v1893, 0.0
      %s1902 = scalar_lea.vmem %s3, 96
      %v1903 = vld [vmem:[%s1902] sm:$0xf]
      %v1904 = vld [vmem:[%s1902 + $0x4] sm:$0xf]
      %v1905 = vld [vmem:[%s1902 + $0x8] sm:$0xf]
      %v1906 = vld [vmem:[%s1902 + $0xc] sm:$0xf]
      %v1907 = vpack.c.bf16 %v1896, %v1894
      %v1908 = vpack.c.bf16 %v1897, %v1895
      %v1909 = vpack.c.bf16 %v1900, %v1898
      %v1910 = vpack.c.bf16 %v1901, %v1899
      %v1915 = vunpack.c.l.b16 %v1903
      %v1916 = vunpack.c.l.b16 %v1904
      %v1917 = vunpack.c.l.b16 %v1905
      %v1918 = vunpack.c.l.b16 %v1906
      %v1919 = vpack.c.b16 %v1916, %v1915
      %v1920 = vpack.c.b16 %v1918, %v1917
      %v1922 = vsel %vm1301, %v1919, 0
      %v1925 = vsel %vm1301, %v1920, 0
      %1927 = vmatprep.subr.bf16.mxu0 0
      %1928 = vmatpush1.bf16.msra.mxu0 0
      %1929 = vmatprep.subr.bf16.mxu0 0
      %1930 = vmatpush1.bf16.msra.mxu0 0
      %1931 = vmatprep.subr.bf16.mxu0 0
      %1932 = vmatpush1.bf16.msra.mxu0 0
      %1933 = vmatprep.subr.bf16.mxu0 0
      %1934 = vmatpush1.bf16.msra.mxu0 0
      %1935 = vmatprep.subr.bf16.mxu0 0
      %1936 = vmatpush1.bf16.msra.mxu0 0
      %1937 = vmatprep.subr.bf16.mxu0 0
      %1938 = vmatpush1.bf16.msra.mxu0 0
      %1939 = vmatprep.subr.bf16.mxu0 %v1910
      %1940 = vmatpush1.bf16.msra.mxu0 %v1909
      %1941 = vmatprep.subr.bf16.mxu0 %v1908
      %1942 = vmatpush1.bf16.msra.mxu0 %v1907
      %1943 = vmatprep.subr.bf16.mxu0 0
      %1944 = vmatpush2.bf16.msra.mxu0 0
      %1945 = vmatprep.subr.bf16.mxu0 0
      %1946 = vmatpush2.bf16.msra.mxu0 0
      %1947 = vmatprep.subr.bf16.mxu0 0
      %1948 = vmatpush2.bf16.msra.mxu0 0
      %1949 = vmatprep.subr.bf16.mxu0 0
      %1950 = vmatpush2.bf16.msra.mxu0 0
      %1951 = vmatprep.subr.bf16.mxu0 0
      %1952 = vmatpush2.bf16.msra.mxu0 0
      %1953 = vmatprep.subr.bf16.mxu0 0
      %1954 = vmatpush2.bf16.msra.mxu0 0
      %1955 = vmatprep.subr.bf16.mxu0 0
      %1956 = vmatpush2.bf16.msra.mxu0 0
      %1957 = vmatprep.subr.bf16.mxu0 0
      %1958 = vmatpush2.bf16.msra.mxu0 0
      %1959 = vmatprep.mubr.bf16.mxu0 0
      %1960 = vmatmul.mubr.bf16.gmra.mxu0 %v1922
      %v1961 = vpop.f32.mrf.mxu0
      %v1962 = vadd.f32 0.0, %v1961
      %v1963 = vpop.f32.mrf.mxu0
      %v1964 = vadd.f32 0.0, %v1963
      %v1965 = vpop.f32.mrf.mxu0
      %v1966 = vadd.f32 0.0, %v1965
      %v1967 = vpop.f32.mrf.mxu0
      %v1968 = vadd.f32 0.0, %v1967
      %1969 = vmatprep.mubr.bf16.mxu0 0
      %1970 = vmatmul.mubr.bf16.gmra.mxu0 %v1925
      %v1971 = vpop.f32.mrf.mxu0
      %v1972 = vadd.f32 0.0, %v1971
      %v1973 = vpop.f32.mrf.mxu0
      %v1974 = vadd.f32 0.0, %v1973
      %v1975 = vpop.f32.mrf.mxu0
      %v1976 = vadd.f32 0.0, %v1975
      %v1977 = vpop.f32.mrf.mxu0
      %v1978 = vadd.f32 0.0, %v1977
      %1979 = vdwg.mxu0
      %v1980 = vadd.f32 %v1862, %v1962
      %v1981 = vadd.f32 %v1863, %v1964
      %v1982 = vadd.f32 %v1864, %v1966
      %v1983 = vadd.f32 %v1865, %v1968
      %v1984 = vadd.f32 %v1866, %v1972
      %v1985 = vadd.f32 %v1867, %v1974
      %v1986 = vadd.f32 %v1868, %v1976
      %v1987 = vadd.f32 %v1869, %v1978
      %1988 = vrot.lane.b32.xlu0 %v1202, 112
      %v1989 = vpop.permute.xlu0 %1988
      %1990 = vrot.lane.b32.xlu0 %v1204, 112
      %v1991 = vpop.permute.xlu0 %1990
      %1992 = vrot.lane.b32.xlu0 %v1206, 112
      %v1993 = vpop.permute.xlu0 %1992
      %1994 = vrot.lane.b32.xlu0 %v1208, 112
      %v1995 = vpop.permute.xlu0 %1994
      %1996 = vrot.lane.b32.xlu0 %v1203, 112
      %v1997 = vpop.permute.xlu0 %1996
      %1998 = vrot.lane.b32.xlu0 %v1205, 112
      %v1999 = vpop.permute.xlu0 %1998
      %2000 = vrot.lane.b32.xlu0 %v1207, 112
      %v2001 = vpop.permute.xlu0 %2000
      %2002 = vrot.lane.b32.xlu0 %v1209, 112
      %v2003 = vpop.permute.xlu0 %2002
      %v2004 = vsel %vm968, %v1989, %v1997
      %v2005 = vsel %vm968, %v1991, %v1999
      %v2006 = vsel %vm968, %v1993, %v2001
      %v2007 = vsel %vm968, %v1995, %v2003
      %v2008 = vsel %vm968, %v1997, %v1989
      %v2009 = vsel %vm968, %v1999, %v1991
      %v2010 = vsel %vm968, %v2001, %v1993
      %v2011 = vsel %vm968, %v2003, %v1995
      %v2012 = vsel %vm973, %v2004, 0.0
      %v2013 = vsel %vm974, %v2008, 0.0
      %v2014 = vsel %vm973, %v2005, 0.0
      %v2015 = vsel %vm974, %v2009, 0.0
      %v2016 = vsel %vm973, %v2006, 0.0
      %v2017 = vsel %vm974, %v2010, 0.0
      %v2018 = vsel %vm973, %v2007, 0.0
      %v2019 = vsel %vm974, %v2011, 0.0
      %s2020 = scalar_lea.vmem %s3, 112
      %v2021 = vld [vmem:[%s2020] sm:$0xf]
      %v2022 = vld [vmem:[%s2020 + $0x4] sm:$0xf]
      %v2023 = vld [vmem:[%s2020 + $0x8] sm:$0xf]
      %v2024 = vld [vmem:[%s2020 + $0xc] sm:$0xf]
      %v2025 = vpack.c.bf16 %v2014, %v2012
      %v2026 = vpack.c.bf16 %v2015, %v2013
      %v2027 = vpack.c.bf16 %v2018, %v2016
      %v2028 = vpack.c.bf16 %v2019, %v2017
      %v2033 = vunpack.c.l.b16 %v2021
      %v2034 = vunpack.c.l.b16 %v2022
      %v2035 = vunpack.c.l.b16 %v2023
      %v2036 = vunpack.c.l.b16 %v2024
      %v2037 = vpack.c.b16 %v2034, %v2033
      %v2038 = vpack.c.b16 %v2036, %v2035
      %v2040 = vsel %vm1301, %v2037, 0
      %v2043 = vsel %vm1301, %v2038, 0
      %2045 = vmatprep.subr.bf16.mxu0 0
      %2046 = vmatpush1.bf16.msra.mxu0 0
      %2047 = vmatprep.subr.bf16.mxu0 0
      %2048 = vmatpush1.bf16.msra.mxu0 0
      %2049 = vmatprep.subr.bf16.mxu0 0
      %2050 = vmatpush1.bf16.msra.mxu0 0
      %2051 = vmatprep.subr.bf16.mxu0 0
      %2052 = vmatpush1.bf16.msra.mxu0 0
      %2053 = vmatprep.subr.bf16.mxu0 0
      %2054 = vmatpush1.bf16.msra.mxu0 0
      %2055 = vmatprep.subr.bf16.mxu0 0
      %2056 = vmatpush1.bf16.msra.mxu0 0
      %2057 = vmatprep.subr.bf16.mxu0 %v2028
      %2058 = vmatpush1.bf16.msra.mxu0 %v2027
      %2059 = vmatprep.subr.bf16.mxu0 %v2026
      %2060 = vmatpush1.bf16.msra.mxu0 %v2025
      %2061 = vmatprep.subr.bf16.mxu0 0
      %2062 = vmatpush2.bf16.msra.mxu0 0
      %2063 = vmatprep.subr.bf16.mxu0 0
      %2064 = vmatpush2.bf16.msra.mxu0 0
      %2065 = vmatprep.subr.bf16.mxu0 0
      %2066 = vmatpush2.bf16.msra.mxu0 0
      %2067 = vmatprep.subr.bf16.mxu0 0
      %2068 = vmatpush2.bf16.msra.mxu0 0
      %2069 = vmatprep.subr.bf16.mxu0 0
      %2070 = vmatpush2.bf16.msra.mxu0 0
      %2071 = vmatprep.subr.bf16.mxu0 0
      %2072 = vmatpush2.bf16.msra.mxu0 0
      %2073 = vmatprep.subr.bf16.mxu0 0
      %2074 = vmatpush2.bf16.msra.mxu0 0
      %2075 = vmatprep.subr.bf16.mxu0 0
      %2076 = vmatpush2.bf16.msra.mxu0 0
      %2077 = vmatprep.mubr.bf16.mxu0 0
      %2078 = vmatmul.mubr.bf16.gmra.mxu0 %v2040
      %v2079 = vpop.f32.mrf.mxu0
      %v2080 = vadd.f32 0.0, %v2079
      %v2081 = vpop.f32.mrf.mxu0
      %v2082 = vadd.f32 0.0, %v2081
      %v2083 = vpop.f32.mrf.mxu0
      %v2084 = vadd.f32 0.0, %v2083
      %v2085 = vpop.f32.mrf.mxu0
      %v2086 = vadd.f32 0.0, %v2085
      %2087 = vmatprep.mubr.bf16.mxu0 0
      %2088 = vmatmul.mubr.bf16.gmra.mxu0 %v2043
      %v2089 = vpop.f32.mrf.mxu0
      %v2090 = vadd.f32 0.0, %v2089
      %v2091 = vpop.f32.mrf.mxu0
      %v2092 = vadd.f32 0.0, %v2091
      %v2093 = vpop.f32.mrf.mxu0
      %v2094 = vadd.f32 0.0, %v2093
      %v2095 = vpop.f32.mrf.mxu0
      %v2096 = vadd.f32 0.0, %v2095
      %2097 = vdwg.mxu0
      %v2098 = vadd.f32 %v1980, %v2080
      %v2099 = vadd.f32 %v1981, %v2082
      %v2100 = vadd.f32 %v1982, %v2084
      %v2101 = vadd.f32 %v1983, %v2086
      %v2102 = vadd.f32 %v1984, %v2090
      %v2103 = vadd.f32 %v1985, %v2092
      %v2104 = vadd.f32 %v1986, %v2094
      %v2105 = vadd.f32 %v1987, %v2096
      %2106 = vrot.lane.b32.xlu0 %v1202, 111
      %v2107 = vpop.permute.xlu0 %2106
      %2108 = vrot.lane.b32.xlu0 %v1204, 111
      %v2109 = vpop.permute.xlu0 %2108
      %2110 = vrot.lane.b32.xlu0 %v1206, 111
      %v2111 = vpop.permute.xlu0 %2110
      %2112 = vrot.lane.b32.xlu0 %v1208, 111
      %v2113 = vpop.permute.xlu0 %2112
      %2114 = vrot.lane.b32.xlu0 %v1203, 111
      %v2115 = vpop.permute.xlu0 %2114
      %2116 = vrot.lane.b32.xlu0 %v1205, 111
      %v2117 = vpop.permute.xlu0 %2116
      %2118 = vrot.lane.b32.xlu0 %v1207, 111
      %v2119 = vpop.permute.xlu0 %2118
      %2120 = vrot.lane.b32.xlu0 %v1209, 111
      %v2121 = vpop.permute.xlu0 %2120
      %v2122 = vsel %vm1071, %v2107, %v2115
      %v2123 = vsel %vm1071, %v2109, %v2117
      %v2124 = vsel %vm1071, %v2111, %v2119
      %v2125 = vsel %vm1071, %v2113, %v2121
      %v2126 = vsel %vm1071, %v2115, %v2107
      %v2127 = vsel %vm1071, %v2117, %v2109
      %v2128 = vsel %vm1071, %v2119, %v2111
      %v2129 = vsel %vm1071, %v2121, %v2113
      %v2130 = vsel %vm1076, %v2122, 0.0
      %v2131 = vsel %vm1077, %v2126, 0.0
      %v2132 = vsel %vm1076, %v2123, 0.0
      %v2133 = vsel %vm1077, %v2127, 0.0
      %v2134 = vsel %vm1076, %v2124, 0.0
      %v2135 = vsel %vm1077, %v2128, 0.0
      %v2136 = vsel %vm1076, %v2125, 0.0
      %v2137 = vsel %vm1077, %v2129, 0.0
      %s2138 = scalar_lea.vmem %s3, 128
      %v2139 = vld [vmem:[%s2138] sm:$0xf]
      %v2140 = vld [vmem:[%s2138 + $0x4] sm:$0xf]
      %v2141 = vld [vmem:[%s2138 + $0x8] sm:$0xf]
      %v2142 = vld [vmem:[%s2138 + $0xc] sm:$0xf]
      %v2143 = vpack.c.bf16 %v2132, %v2130
      %v2144 = vpack.c.bf16 %v2133, %v2131
      %v2145 = vpack.c.bf16 %v2136, %v2134
      %v2146 = vpack.c.bf16 %v2137, %v2135
      %v2151 = vunpack.c.l.b16 %v2139
      %v2152 = vunpack.c.l.b16 %v2140
      %v2153 = vunpack.c.l.b16 %v2141
      %v2154 = vunpack.c.l.b16 %v2142
      %v2155 = vpack.c.b16 %v2152, %v2151
      %v2156 = vpack.c.b16 %v2154, %v2153
      %v2158 = vsel %vm1301, %v2155, 0
      %v2161 = vsel %vm1301, %v2156, 0
      %2163 = vmatprep.subr.bf16.mxu0 0
      %2164 = vmatpush1.bf16.msra.mxu0 0
      %2165 = vmatprep.subr.bf16.mxu0 0
      %2166 = vmatpush1.bf16.msra.mxu0 0
      %2167 = vmatprep.subr.bf16.mxu0 0
      %2168 = vmatpush1.bf16.msra.mxu0 0
      %2169 = vmatprep.subr.bf16.mxu0 0
      %2170 = vmatpush1.bf16.msra.mxu0 0
      %2171 = vmatprep.subr.bf16.mxu0 0
      %2172 = vmatpush1.bf16.msra.mxu0 0
      %2173 = vmatprep.subr.bf16.mxu0 0
      %2174 = vmatpush1.bf16.msra.mxu0 0
      %2175 = vmatprep.subr.bf16.mxu0 %v2146
      %2176 = vmatpush1.bf16.msra.mxu0 %v2145
      %2177 = vmatprep.subr.bf16.mxu0 %v2144
      %2178 = vmatpush1.bf16.msra.mxu0 %v2143
      %2179 = vmatprep.subr.bf16.mxu0 0
      %2180 = vmatpush2.bf16.msra.mxu0 0
      %2181 = vmatprep.subr.bf16.mxu0 0
      %2182 = vmatpush2.bf16.msra.mxu0 0
      %2183 = vmatprep.subr.bf16.mxu0 0
      %2184 = vmatpush2.bf16.msra.mxu0 0
      %2185 = vmatprep.subr.bf16.mxu0 0
      %2186 = vmatpush2.bf16.msra.mxu0 0
      %2187 = vmatprep.subr.bf16.mxu0 0
      %2188 = vmatpush2.bf16.msra.mxu0 0
      %2189 = vmatprep.subr.bf16.mxu0 0
      %2190 = vmatpush2.bf16.msra.mxu0 0
      %2191 = vmatprep.subr.bf16.mxu0 0
      %2192 = vmatpush2.bf16.msra.mxu0 0
      %2193 = vmatprep.subr.bf16.mxu0 0
      %2194 = vmatpush2.bf16.msra.mxu0 0
      %2195 = vmatprep.mubr.bf16.mxu0 0
      %2196 = vmatmul.mubr.bf16.gmra.mxu0 %v2158
      %v2197 = vpop.f32.mrf.mxu0
      %v2198 = vadd.f32 0.0, %v2197
      %v2199 = vpop.f32.mrf.mxu0
      %v2200 = vadd.f32 0.0, %v2199
      %v2201 = vpop.f32.mrf.mxu0
      %v2202 = vadd.f32 0.0, %v2201
      %v2203 = vpop.f32.mrf.mxu0
      %v2204 = vadd.f32 0.0, %v2203
      %2205 = vmatprep.mubr.bf16.mxu0 0
      %2206 = vmatmul.mubr.bf16.gmra.mxu0 %v2161
      %v2207 = vpop.f32.mrf.mxu0
      %v2208 = vadd.f32 0.0, %v2207
      %v2209 = vpop.f32.mrf.mxu0
      %v2210 = vadd.f32 0.0, %v2209
      %v2211 = vpop.f32.mrf.mxu0
      %v2212 = vadd.f32 0.0, %v2211
      %v2213 = vpop.f32.mrf.mxu0
      %v2214 = vadd.f32 0.0, %v2213
      %2215 = vdwg.mxu0
      %v2216 = vadd.f32 %v2098, %v2198
      %v2217 = vadd.f32 %v2099, %v2200
      %v2218 = vadd.f32 %v2100, %v2202
      %v2219 = vadd.f32 %v2101, %v2204
      %v2220 = vadd.f32 %v2102, %v2208
      %v2221 = vadd.f32 %v2103, %v2210
      %v2222 = vadd.f32 %v2104, %v2212
      %v2223 = vadd.f32 %v2105, %v2214
      %v2224 = vld [vmem:[%s4] sm:$0xff]
      %v2225 = vld [vmem:[%s4 + $0x8] sm:$0xff]
      %v2226 = vld [vmem:[%s4 + $0x10] sm:$0xff]
      %v2227 = vld [vmem:[%s4 + $0x18] sm:$0xff]
      %2229 = vset.pattern.permute.xlu0 0
      %2230 = vperm.xlu0 %2229, %v2224
      %v2231 = vpop.permute.xlu0 %2230
      %2234 = vset.pattern.permute.xlu0 0
      %2235 = vperm.xlu0 %2234, %v2225
      %v2236 = vpop.permute.xlu0 %2235
      %2239 = vset.pattern.permute.xlu0 0
      %2240 = vperm.xlu0 %2239, %v2226
      %v2241 = vpop.permute.xlu0 %2240
      %2244 = vset.pattern.permute.xlu0 0
      %2245 = vperm.xlu0 %2244, %v2227
      %v2246 = vpop.permute.xlu0 %2245
      %v2248 = vadd.f32 %v2216, %v2231
      %v2249 = vadd.f32 %v2217, %v2231
      %v2250 = vadd.f32 %v2218, %v2236
      %v2251 = vadd.f32 %v2219, %v2236
      %v2252 = vadd.f32 %v2220, %v2241
      %v2253 = vadd.f32 %v2221, %v2241
      %v2254 = vadd.f32 %v2222, %v2246
      %v2255 = vadd.f32 %v2223, %v2246
      %v2256 = vmax.f32 %v2248, 0.0
      %v2257 = vmax.f32 %v2249, 0.0
      %v2258 = vmax.f32 %v2250, 0.0
      %v2259 = vmax.f32 %v2251, 0.0
      %v2260 = vmax.f32 %v2252, 0.0
      %v2261 = vmax.f32 %v2253, 0.0
      %v2262 = vmax.f32 %v2254, 0.0
      %v2263 = vmax.f32 %v2255, 0.0
      %2264 = vst [vmem:[%s224] sm:$0xff] %v2256
      %2265 = vst [vmem:[%s224 + $0x8] sm:$0xff] %v2257
      %2266 = vst [vmem:[%s224 + $0x10] sm:$0xff] %v2258
      %2267 = vst [vmem:[%s224 + $0x18] sm:$0xff] %v2259
      %2268 = vst [vmem:[%s224 + $0x20] sm:$0xff] %v2260
      %2269 = vst [vmem:[%s224 + $0x28] sm:$0xff] %v2261
      %2270 = vst [vmem:[%s224 + $0x30] sm:$0xff] %v2262
      %2271 = vst [vmem:[%s224 + $0x38] sm:$0xff] %v2263
      %p2272 = scmp.lt.s32.totalorder %s16, 1
      %s2273 = scalar_select %p2272, %s16, 1
      %s2274 = smul.addr %s2273, 8
      %s2275 = smul.addr %s2274, 8
      %s2276 = scalar_lea.vmem %s5, %s2275
      // Predicated region
      $region41: #{double_conv.1} parent=39 // pred_check
        %p2277 = pneg %p144
      $region42: #{double_conv.1} parent=39 // pred_check_branch
        %2279 = sbr.rel (%p2277) target = $region44
      $region43: #{double_conv.1} parent=39 // pred_region
        _
      $region44: #{double_conv.1} parent=39 // pred_fallthru
        _
    $region40: #{double_conv.1} parent=5 // pred_fallthru
      _
    %p2280 = scmp.le.s32.totalorder 2, %s11
    // Predicated region
    $region45: #{double_conv.1} parent=5 // pred_check
      %p2281 = pneg %p2280
    $region46: #{double_conv.1} parent=5 // pred_check_branch
      %2283 = sbr.rel (%p2281) target = $region48
    $region47: #{double_conv.1} parent=5 // pred_region
      %s2284 = ssub.s32 %s11, 2
      // Predicated region
      $region49: #{double_conv.1} parent=47 // pred_check
        %p2285 = pneg %p150
      $region50: #{double_conv.1} parent=47 // pred_check_branch
        %2287 = sbr.rel (%p2285) target = $region52
      $region51: #{double_conv.1} parent=47 // pred_region
        %p2288 = scmp.lt.s32.totalorder %s17, 1
        %s2289 = scalar_select %p2288, %s17, 1
        %s2290 = smul.addr %s2289, 8
        %s2291 = smul.addr %s2290, 8
        %s2292 = scalar_lea.vmem %s5, %s2291
      $region52: #{double_conv.1} parent=47 // pred_fallthru
        _
    $region48: #{double_conv.1} parent=5 // pred_fallthru
      _
  $region6: #{double_conv.1} parent=0 // loop_footer
    %s15 = sadd.s32 1, %s11
  $region7: #{double_conv.1} parent=0 // loop_footer_branch
    %10 = sbr.rel target = $region3
  $region8: #{double_conv.1} parent=0 // loop_exit
    _

</llo_original>
